<compile_context>
chip_gen: v7x
topology: tpu7x:2x2x1
jax: 0.10.0
libtpu: 0.0.40
codegen_flags: <defaults>
</compile_context>

<pallas_src>
import functools

import jax
import jax.numpy as jnp
from jax.experimental import pallas as pl
from jax.experimental.pallas import tpu as pltpu

HIDDEN = 32          # net_arch = [32, 32]
EPS = 1e-6           # denominator epsilon from the reference forward


def _round_up(n, m):
    return ((n + m - 1) // m) * m


# ----------------------------------------------------------------------------
# Pallas kernel: fused forward of all MLPs + eta backprop + Safty algebra
# for one lane-dense batch tile.  Everything is (rows, BM).
# ----------------------------------------------------------------------------
def safty_kernel(x_ref, w1_ref, b1_ref, w2_ref, b2_ref, w3_ref, b3_ref,
                 w1eT_ref, w2eT_ref, w3e_ref, out_ref,
                 *, S_pad, A, A_pad, n_nets, c4):
    H = HIDDEN
    x = x_ref[...]                                                    # (S_pad, BM)

    # --- fused forward of all n_nets MLPs: keep only post-activations alive ---
    h1 = jnp.maximum(
        jnp.dot(w1_ref[...], x, preferred_element_type=jnp.float32) + b1_ref[...], 0.0)
    h2 = jnp.maximum(
        jnp.dot(w2_ref[...], h1, preferred_element_type=jnp.float32) + b2_ref[...], 0.0)
    heads = (jnp.dot(w3_ref[...], h2, preferred_element_type=jnp.float32)
             + b3_ref[...])                                           # (R_pad, BM)

    # --- analytic backprop of the eta MLP (its hidden block is the last H rows).
    # ReLU masks come from post-activations: h > 0 <=> z > 0 (incl. relu'(0)=0).
    off = H * (n_nets - 1)
    dz2 = jnp.where(h2[off:off + H, :] > 0.0, w3e_ref[...], 0.0)      # (H, BM)
    dh1 = jnp.dot(w2eT_ref[...], dz2, preferred_element_type=jnp.float32)
    dz1 = jnp.where(h1[off:off + H, :] > 0.0, dh1, 0.0)
    grad_eta = jnp.dot(w1eT_ref[...], dz1,
                       preferred_element_type=jnp.float32)            # (S_pad, BM)

    # --- Safty_Dynamics algebra (VPU elementwise + tiny sublane reductions) ---
    f_hat = heads[0:S_pad, :]                                         # 8-aligned slice
    g_off = S_pad + A_pad
    eta_off = g_off + A * S_pad
    eta = heads[eta_off:eta_off + 1, :]                               # (1, BM)

    # num = grad_eta . (f_hat + g @ alpha) + c4*eta, with g@alpha folded into the
    # reduction (no (S,BM) galpha temporary).
    num = jnp.sum(grad_eta * f_hat, axis=0, keepdims=True) + c4 * eta
    for a in range(A):
        ga = heads[g_off + a * S_pad: g_off + (a + 1) * S_pad, :]     # 8-aligned
        alpha_a = heads[S_pad + a: S_pad + a + 1, :]
        num = num + alpha_a * jnp.sum(grad_eta * ga, axis=0, keepdims=True)
    den = jnp.sum(grad_eta * grad_eta, axis=0, keepdims=True) + EPS
    criterion = jnp.maximum(-num / den, 0.0)                          # relu

    # two direct, disjoint, 8-aligned stores (no concat temporary)
    out_ref[0:S_pad, :] = f_hat + criterion * grad_eta                # f
    out_ref[S_pad:, :] = heads[S_pad:, :]                             # alpha, g, eta


# ----------------------------------------------------------------------------
# Wrapper: weight fusion (glue), batch padding/tiling, pallas_call, un-packing.
# ----------------------------------------------------------------------------
@functools.partial(jax.jit, static_argnames=("c4", "block_b"))
def safty_forward(x, params, c4, block_b=1024):
    x = x.astype(jnp.float32)
    B, S = x.shape
    A = len(params["g"])
    H = HIDDEN
    nets = [params["f_hat"], params["alpha"]] + list(params["g"]) + [params["eta"]]
    n = len(nets)                                # A + 3
    out_dims = [S, A] + [S] * A + [1]

    # 8-aligned packed output row layout:
    #   [ f (S_pad) | alpha (A_pad) | g_0..g_{A-1} (S_pad each) | eta (8) ]
    S_pad = _round_up(S, 8)
    A_pad = _round_up(A, 8)
    g_off = S_pad + A_pad
    eta_off = g_off + A * S_pad
    R_pad = eta_off + 8
    row_offs = [0, S_pad] + [g_off + a * S_pad for a in range(A)] + [eta_off]

    # --- host-side weight fusion (parameter-only glue; padded rows/cols are zero) ---
    W1a = jnp.zeros((H * n, S_pad), jnp.float32).at[:, :S].set(
        jnp.concatenate([p[0] for p in nets], axis=0))                # (H*n, S_pad)
    b1a = jnp.concatenate([p[1] for p in nets]).reshape(H * n, 1)
    W2a = jnp.zeros((H * n, H * n), jnp.float32)
    for i, p in enumerate(nets):
        W2a = W2a.at[i * H:(i + 1) * H, i * H:(i + 1) * H].set(p[2])  # block-diagonal
    b2a = jnp.concatenate([p[3] for p in nets]).reshape(H * n, 1)
    W3a = jnp.zeros((R_pad, H * n), jnp.float32)
    b3a = jnp.zeros((R_pad, 1), jnp.float32)
    for i, (p, od, ro) in enumerate(zip(nets, out_dims, row_offs)):
        W3a = W3a.at[ro:ro + od, i * H:(i + 1) * H].set(p[4])
        b3a = b3a.at[ro:ro + od, 0].set(p[5].reshape(od))

    eta_p = params["eta"]
    W1eT = jnp.zeros((S_pad, H), jnp.float32).at[:S, :].set(eta_p[0].T)   # (S_pad, H)
    W2eT = eta_p[2].T                                                     # (H, H)
    w3e = eta_p[4].reshape(H, 1)                                          # eta out row

    # --- batch padding / lane-dense tiling ---
    # >= 2 tiles whenever B > 128 so both v7x TensorCores get work; tile width
    # capped at block_b (1024 default) to amortize per-grid-step overhead on
    # single-TC v5e/v6e while staying far under the scoped-VMEM limit.
    bm = max(128, min(block_b, _round_up(-(-B // 2), 128)))
    Bp = _round_up(B, bm)
    x_t = jnp.zeros((S_pad, Bp), jnp.float32).at[:S, :B].set(x.T)

    weights = [W1a, b1a, W2a, b2a, W3a, b3a, W1eT, W2eT, w3e]

    def full_spec(arr):
        nd = arr.ndim
        return pl.BlockSpec(arr.shape, lambda i, _nd=nd: (0,) * _nd)

    out = pl.pallas_call(
        functools.partial(safty_kernel, S_pad=S_pad, A=A, A_pad=A_pad,
                          n_nets=n, c4=c4),
        grid=(Bp // bm,),
        in_specs=[pl.BlockSpec((S_pad, bm), lambda i: (0, i))]
                 + [full_spec(w) for w in weights],
        out_specs=pl.BlockSpec((R_pad, bm), lambda i: (0, i)),
        out_shape=jax.ShapeDtypeStruct((R_pad, Bp), jnp.float32),
        compiler_params=pltpu.CompilerParams(
            dimension_semantics=("parallel",),
            vmem_limit_bytes=32 * 1024 * 1024),
    )(x_t, *weights)

    # --- split / reshape to the PyTorch output shapes (glue) ---
    out = out[:, :B]
    f = out[0:S].T.reshape(B, S, 1)                                   # (B, S, 1)
    alpha = out[S_pad:S_pad + A].T.reshape(B, A, 1)                   # (B, A, 1)
    g = jnp.stack([out[g_off + a * S_pad: g_off + a * S_pad + S].T
                   for a in range(A)], axis=2)                        # (B, S, A)
    eta = out[eta_off:eta_off + 1].T.reshape(B, 1, 1)                 # (B, 1, 1)
    return f, g, alpha, eta


# ----------------------------------------------------------------------------
# Deterministic parameters (PyTorch-Linear-style uniform init), layout (out, in).
# ----------------------------------------------------------------------------
def init_mlp_params(key, in_dim, out_dim, hidden=HIDDEN):
    ks = jax.random.split(key, 6)

    def u(k, shape, fan_in):
        b = 1.0 / jnp.sqrt(jnp.float32(fan_in))
        return jax.random.uniform(k, shape, jnp.float32, -b, b)

    W1 = u(ks[0], (hidden, in_dim), in_dim)
    b1 = u(ks[1], (hidden,), in_dim)
    W2 = u(ks[2], (hidden, hidden), hidden)
    b2 = u(ks[3], (hidden,), hidden)
    W3 = u(ks[4], (out_dim, hidden), hidden)
    b3 = u(ks[5], (out_dim,), hidden)
    return (W1, b1, W2, b2, W3, b3)


# ----------------------------------------------------------------------------
# Pure-JAX reference (jax.grad for grad_eta, mirroring torch.autograd.grad).
# ----------------------------------------------------------------------------
def _mlp_ref(p, x):
    W1, b1, W2, b2, W3, b3 = p
    h1 = jnp.maximum(x @ W1.T + b1, 0.0)
    h2 = jnp.maximum(h1 @ W2.T + b2, 0.0)
    return h2 @ W3.T + b3


def ref_forward(x, params, c4):
    B, S = x.shape
    f_hat = _mlp_ref(params["f_hat"], x)[:, :, None]
    alpha = _mlp_ref(params["alpha"], x)[:, :, None]
    g = jnp.stack([_mlp_ref(p, x).reshape(-1, S, 1) for p in params["g"]], axis=2)[..., 0]
    eta = _mlp_ref(params["eta"], x).reshape(-1, 1, 1)
    grad_eta = jax.grad(lambda xx: jnp.sum(_mlp_ref(params["eta"], xx)))(x)[:, :, None]
    num = jnp.matmul(jnp.swapaxes(grad_eta, 1, 2), f_hat + jnp.matmul(g, alpha)) + c4 * eta
    den = jnp.sum(grad_eta ** 2, axis=1, keepdims=True) + EPS
    criterion = jnp.maximum(-num / den, 0.0)
    f = f_hat + criterion * grad_eta
    return f, g, alpha, eta


if __name__ == "__main__":
    # TODO(synk): the reference's `eta` callable and `create_mlp` are not defined
    # in the provided source; both are synthesized here as [in->32->32->out] ReLU MLPs.
    key = jax.random.PRNGKey(0)
    S, A, c4 = 4, 2, 0.5
    kx, kf, ka, ke, kg = jax.random.split(key, 5)
    gkeys = jax.random.split(kg, A)
    params = {
        "f_hat": init_mlp_params(kf, S, S),
        "alpha": init_mlp_params(ka, S, A),
        "g": [init_mlp_params(k, S, S) for k in gkeys],
        "eta": init_mlp_params(ke, S, 1),
    }

    names = ("f", "g", "alpha", "eta")
    for B in (200, 1024):   # 200 -> two 128-wide tiles (padded); 1024 -> two 512-wide tiles
        x = jax.random.normal(jax.random.fold_in(kx, B), (B, S), jnp.float32)
        outs = jax.block_until_ready(safty_forward(x, params, c4=c4))
        refs = ref_forward(x, params, c4)
        for nm, o, r in zip(names, outs, refs):
            assert o.shape == r.shape, (nm, o.shape, r.shape)
            err = float(jnp.max(jnp.abs(o - r)))
            assert jnp.allclose(o, r, rtol=1e-3, atol=1e-4), (nm, err)

    print("KERNEL_OK")
</pallas_src>

<mosaic_0001>
module attributes {stable_mosaic.version = 11 : i64} {
  func.func @safty_kernel(%arg0: i32, %arg1: memref<8x128xf32, #tpu.memory_space<vmem>>, %arg2: memref<160x8xf32, #tpu.memory_space<vmem>>, %arg3: memref<160x1xf32, #tpu.memory_space<vmem>>, %arg4: memref<160x160xf32, #tpu.memory_space<vmem>>, %arg5: memref<160x1xf32, #tpu.memory_space<vmem>>, %arg6: memref<40x160xf32, #tpu.memory_space<vmem>>, %arg7: memref<40x1xf32, #tpu.memory_space<vmem>>, %arg8: memref<8x32xf32, #tpu.memory_space<vmem>>, %arg9: memref<32x32xf32, #tpu.memory_space<vmem>>, %arg10: memref<32x1xf32, #tpu.memory_space<vmem>>, %arg11: memref<40x128xf32, #tpu.memory_space<vmem>>) attributes {dimension_semantics = [#tpu.dimension_semantics<parallel>], iteration_bounds = array<i64: 2>, scalar_prefetch = 0 : i64, scratch_operands = 0 : i64, tpu.core_type = #tpu.core_type<tc>, window_params = [{transform_indices = @transform_0, window_bounds = array<i64: 8, 128>}, {pipeline_mode = #tpu.pipeline_mode<synchronous>, transform_indices = @transform_1, window_bounds = array<i64: 160, 8>}, {pipeline_mode = #tpu.pipeline_mode<synchronous>, transform_indices = @transform_2, window_bounds = array<i64: 160, 1>}, {pipeline_mode = #tpu.pipeline_mode<synchronous>, transform_indices = @transform_3, window_bounds = array<i64: 160, 160>}, {pipeline_mode = #tpu.pipeline_mode<synchronous>, transform_indices = @transform_4, window_bounds = array<i64: 160, 1>}, {pipeline_mode = #tpu.pipeline_mode<synchronous>, transform_indices = @transform_5, window_bounds = array<i64: 40, 160>}, {pipeline_mode = #tpu.pipeline_mode<synchronous>, transform_indices = @transform_6, window_bounds = array<i64: 40, 1>}, {pipeline_mode = #tpu.pipeline_mode<synchronous>, transform_indices = @transform_7, window_bounds = array<i64: 8, 32>}, {pipeline_mode = #tpu.pipeline_mode<synchronous>, transform_indices = @transform_8, window_bounds = array<i64: 32, 32>}, {pipeline_mode = #tpu.pipeline_mode<synchronous>, transform_indices = @transform_9, window_bounds = array<i64: 32, 1>}, {transform_indices = @transform_10, window_bounds = array<i64: 40, 128>}]} {
    %c0 = arith.constant 0 : index
    %c0_0 = arith.constant 0 : index
    %0 = vector.load %arg1[%c0, %c0_0] : memref<8x128xf32, #tpu.memory_space<vmem>>, vector<8x128xf32>
    %c0_1 = arith.constant 0 : index
    %c0_2 = arith.constant 0 : index
    %1 = vector.load %arg2[%c0_1, %c0_2] : memref<160x8xf32, #tpu.memory_space<vmem>>, vector<160x8xf32>
    %cst = arith.constant dense<0.000000e+00> : vector<160x128xf32>
    %2 = tpu.matmul %1, %0, %cst {dimension_numbers = #tpu.dot_dimension_numbers<[1], [0], [0], [1], [0, 0, 1, 1], [], []>} : vector<160x8xf32>, vector<8x128xf32>, vector<160x128xf32> -> vector<160x128xf32>
    %c0_3 = arith.constant 0 : index
    %c0_4 = arith.constant 0 : index
    %3 = vector.load %arg3[%c0_3, %c0_4] : memref<160x1xf32, #tpu.memory_space<vmem>>, vector<160x1xf32>
    %4 = vector.broadcast %3 : vector<160x1xf32> to vector<160x128xf32>
    %5 = arith.addf %2, %4 : vector<160x128xf32>
    %cst_5 = arith.constant 0.000000e+00 : f32
    %6 = vector.broadcast %cst_5 : f32 to vector<160x128xf32>
    %7 = arith.maximumf %5, %6 : vector<160x128xf32>
    %c0_6 = arith.constant 0 : index
    %c0_7 = arith.constant 0 : index
    %8 = vector.load %arg4[%c0_6, %c0_7] : memref<160x160xf32, #tpu.memory_space<vmem>>, vector<160x160xf32>
    %cst_8 = arith.constant dense<0.000000e+00> : vector<160x128xf32>
    %9 = tpu.matmul %8, %7, %cst_8 {dimension_numbers = #tpu.dot_dimension_numbers<[1], [0], [0], [1], [0, 0, 1, 1], [], []>} : vector<160x160xf32>, vector<160x128xf32>, vector<160x128xf32> -> vector<160x128xf32>
    %c0_9 = arith.constant 0 : index
    %c0_10 = arith.constant 0 : index
    %10 = vector.load %arg5[%c0_9, %c0_10] : memref<160x1xf32, #tpu.memory_space<vmem>>, vector<160x1xf32>
    %11 = vector.broadcast %10 : vector<160x1xf32> to vector<160x128xf32>
    %12 = arith.addf %9, %11 : vector<160x128xf32>
    %cst_11 = arith.constant 0.000000e+00 : f32
    %13 = vector.broadcast %cst_11 : f32 to vector<160x128xf32>
    %14 = arith.maximumf %12, %13 : vector<160x128xf32>
    %c0_12 = arith.constant 0 : index
    %c0_13 = arith.constant 0 : index
    %15 = vector.load %arg6[%c0_12, %c0_13] : memref<40x160xf32, #tpu.memory_space<vmem>>, vector<40x160xf32>
    %cst_14 = arith.constant dense<0.000000e+00> : vector<40x128xf32>
    %16 = tpu.matmul %15, %14, %cst_14 {dimension_numbers = #tpu.dot_dimension_numbers<[1], [0], [0], [1], [0, 0, 1, 1], [], []>} : vector<40x160xf32>, vector<160x128xf32>, vector<40x128xf32> -> vector<40x128xf32>
    %c0_15 = arith.constant 0 : index
    %c0_16 = arith.constant 0 : index
    %17 = vector.load %arg7[%c0_15, %c0_16] : memref<40x1xf32, #tpu.memory_space<vmem>>, vector<40x1xf32>
    %18 = vector.broadcast %17 : vector<40x1xf32> to vector<40x128xf32>
    %19 = arith.addf %16, %18 : vector<40x128xf32>
    %20 = vector.extract_strided_slice %14 {offsets = [128, 0], sizes = [32, 128], strides = [1, 1]} : vector<160x128xf32> to vector<32x128xf32>
    %cst_17 = arith.constant 0.000000e+00 : f32
    %21 = vector.broadcast %cst_17 : f32 to vector<32x128xf32>
    %22 = arith.cmpf ogt, %20, %21 : vector<32x128xf32>
    %c0_18 = arith.constant 0 : index
    %c0_19 = arith.constant 0 : index
    %23 = vector.load %arg10[%c0_18, %c0_19] : memref<32x1xf32, #tpu.memory_space<vmem>>, vector<32x1xf32>
    %cst_20 = arith.constant 0.000000e+00 : f32
    %24 = vector.shape_cast %23 : vector<32x1xf32> to vector<32x1xf32>
    %25 = vector.broadcast %24 : vector<32x1xf32> to vector<32x128xf32>
    %26 = vector.broadcast %cst_20 : f32 to vector<32x128xf32>
    %27 = arith.select %22, %25, %26 : vector<32x128xi1>, vector<32x128xf32>
    %c0_21 = arith.constant 0 : index
    %c0_22 = arith.constant 0 : index
    %28 = vector.load %arg9[%c0_21, %c0_22] : memref<32x32xf32, #tpu.memory_space<vmem>>, vector<32x32xf32>
    %cst_23 = arith.constant dense<0.000000e+00> : vector<32x128xf32>
    %29 = tpu.matmul %28, %27, %cst_23 {dimension_numbers = #tpu.dot_dimension_numbers<[1], [0], [0], [1], [0, 0, 1, 1], [], []>} : vector<32x32xf32>, vector<32x128xf32>, vector<32x128xf32> -> vector<32x128xf32>
    %30 = vector.extract_strided_slice %7 {offsets = [128, 0], sizes = [32, 128], strides = [1, 1]} : vector<160x128xf32> to vector<32x128xf32>
    %cst_24 = arith.constant 0.000000e+00 : f32
    %31 = vector.broadcast %cst_24 : f32 to vector<32x128xf32>
    %32 = arith.cmpf ogt, %30, %31 : vector<32x128xf32>
    %cst_25 = arith.constant 0.000000e+00 : f32
    %33 = vector.broadcast %cst_25 : f32 to vector<32x128xf32>
    %34 = arith.select %32, %29, %33 : vector<32x128xi1>, vector<32x128xf32>
    %c0_26 = arith.constant 0 : index
    %c0_27 = arith.constant 0 : index
    %35 = vector.load %arg8[%c0_26, %c0_27] : memref<8x32xf32, #tpu.memory_space<vmem>>, vector<8x32xf32>
    %cst_28 = arith.constant dense<0.000000e+00> : vector<8x128xf32>
    %36 = tpu.matmul %35, %34, %cst_28 {dimension_numbers = #tpu.dot_dimension_numbers<[1], [0], [0], [1], [0, 0, 1, 1], [], []>} : vector<8x32xf32>, vector<32x128xf32>, vector<8x128xf32> -> vector<8x128xf32>
    %37 = vector.extract_strided_slice %19 {offsets = [0, 0], sizes = [8, 128], strides = [1, 1]} : vector<40x128xf32> to vector<8x128xf32>
    %38 = vector.extract_strided_slice %19 {offsets = [32, 0], sizes = [1, 128], strides = [1, 1]} : vector<40x128xf32> to vector<1x128xf32>
    %39 = arith.mulf %36, %37 : vector<8x128xf32>
    %cst_29 = arith.constant dense<0.000000e+00> : vector<128xf32>
    %40 = vector.multi_reduction <add>, %39, %cst_29 [0] : vector<8x128xf32> to vector<128xf32>
    %41 = vector.shape_cast %40 : vector<128xf32> to vector<1x128xf32>
    %cst_30 = arith.constant 5.000000e-01 : f32
    %42 = vector.broadcast %cst_30 : f32 to vector<1x128xf32>
    %43 = arith.mulf %42, %38 : vector<1x128xf32>
    %44 = arith.addf %41, %43 : vector<1x128xf32>
    %45 = vector.extract_strided_slice %19 {offsets = [16, 0], sizes = [8, 128], strides = [1, 1]} : vector<40x128xf32> to vector<8x128xf32>
    %46 = vector.extract_strided_slice %19 {offsets = [8, 0], sizes = [1, 128], strides = [1, 1]} : vector<40x128xf32> to vector<1x128xf32>
    %47 = arith.mulf %36, %45 : vector<8x128xf32>
    %cst_31 = arith.constant dense<0.000000e+00> : vector<128xf32>
    %48 = vector.multi_reduction <add>, %47, %cst_31 [0] : vector<8x128xf32> to vector<128xf32>
    %49 = vector.shape_cast %48 : vector<128xf32> to vector<1x128xf32>
    %50 = arith.mulf %46, %49 : vector<1x128xf32>
    %51 = arith.addf %44, %50 : vector<1x128xf32>
    %52 = vector.extract_strided_slice %19 {offsets = [24, 0], sizes = [8, 128], strides = [1, 1]} : vector<40x128xf32> to vector<8x128xf32>
    %53 = vector.extract_strided_slice %19 {offsets = [9, 0], sizes = [1, 128], strides = [1, 1]} : vector<40x128xf32> to vector<1x128xf32>
    %54 = arith.mulf %36, %52 : vector<8x128xf32>
    %cst_32 = arith.constant dense<0.000000e+00> : vector<128xf32>
    %55 = vector.multi_reduction <add>, %54, %cst_32 [0] : vector<8x128xf32> to vector<128xf32>
    %56 = vector.shape_cast %55 : vector<128xf32> to vector<1x128xf32>
    %57 = arith.mulf %53, %56 : vector<1x128xf32>
    %58 = arith.addf %51, %57 : vector<1x128xf32>
    %59 = arith.mulf %36, %36 : vector<8x128xf32>
    %cst_33 = arith.constant dense<0.000000e+00> : vector<128xf32>
    %60 = vector.multi_reduction <add>, %59, %cst_33 [0] : vector<8x128xf32> to vector<128xf32>
    %61 = vector.shape_cast %60 : vector<128xf32> to vector<1x128xf32>
    %cst_34 = arith.constant 9.99999997E-7 : f32
    %62 = vector.broadcast %cst_34 : f32 to vector<1x128xf32>
    %63 = arith.addf %61, %62 : vector<1x128xf32>
    %cst_35 = arith.constant 0.000000e+00 : f32
    %64 = vector.broadcast %cst_35 : f32 to vector<1x128xf32>
    %65 = arith.subf %64, %58 : vector<1x128xf32>
    %66 = arith.divf %65, %63 : vector<1x128xf32>
    %cst_36 = arith.constant 0.000000e+00 : f32
    %67 = vector.broadcast %cst_36 : f32 to vector<1x128xf32>
    %68 = arith.maximumf %66, %67 : vector<1x128xf32>
    %69 = vector.broadcast %68 : vector<1x128xf32> to vector<8x128xf32>
    %70 = arith.mulf %69, %36 : vector<8x128xf32>
    %71 = arith.addf %37, %70 : vector<8x128xf32>
    %c0_37 = arith.constant 0 : index
    %c0_38 = arith.constant 0 : index
    %72 = vector.load %arg11[%c0_37, %c0_38] : memref<40x128xf32, #tpu.memory_space<vmem>>, vector<8x128xf32>
    tpu.vector_store %arg11[%c0_37, %c0_38], %71 {strides = array<i32>} : memref<40x128xf32, #tpu.memory_space<vmem>>, vector<8x128xf32>,
    %73 = vector.extract_strided_slice %19 {offsets = [8, 0], sizes = [32, 128], strides = [1, 1]} : vector<40x128xf32> to vector<32x128xf32>
    %c8 = arith.constant 8 : index
    %c0_39 = arith.constant 0 : index
    %74 = vector.load %arg11[%c8, %c0_39] : memref<40x128xf32, #tpu.memory_space<vmem>>, vector<32x128xf32>
    tpu.vector_store %arg11[%c8, %c0_39], %73 {strides = array<i32>} : memref<40x128xf32, #tpu.memory_space<vmem>>, vector<32x128xf32>,
    return
  }
  func.func @transform_0(%arg0: i32) -> (i32, i32) {
    %c0_i32 = arith.constant 0 : i32
    %c0_i32_0 = arith.constant 0 : i32
    return %c0_i32, %arg0 : i32, i32
  }
  func.func @transform_1(%arg0: i32) -> (i32, i32) {
    %c0_i32 = arith.constant 0 : i32
    %c0_i32_0 = arith.constant 0 : i32
    %c0_i32_1 = arith.constant 0 : i32
    return %c0_i32, %c0_i32_0 : i32, i32
  }
  func.func @transform_2(%arg0: i32) -> (i32, i32) {
    %c0_i32 = arith.constant 0 : i32
    %c0_i32_0 = arith.constant 0 : i32
    %c0_i32_1 = arith.constant 0 : i32
    return %c0_i32, %c0_i32_0 : i32, i32
  }
  func.func @transform_3(%arg0: i32) -> (i32, i32) {
    %c0_i32 = arith.constant 0 : i32
    %c0_i32_0 = arith.constant 0 : i32
    %c0_i32_1 = arith.constant 0 : i32
    return %c0_i32, %c0_i32_0 : i32, i32
  }
  func.func @transform_4(%arg0: i32) -> (i32, i32) {
    %c0_i32 = arith.constant 0 : i32
    %c0_i32_0 = arith.constant 0 : i32
    %c0_i32_1 = arith.constant 0 : i32
    return %c0_i32, %c0_i32_0 : i32, i32
  }
  func.func @transform_5(%arg0: i32) -> (i32, i32) {
    %c0_i32 = arith.constant 0 : i32
    %c0_i32_0 = arith.constant 0 : i32
    %c0_i32_1 = arith.constant 0 : i32
    return %c0_i32, %c0_i32_0 : i32, i32
  }
  func.func @transform_6(%arg0: i32) -> (i32, i32) {
    %c0_i32 = arith.constant 0 : i32
    %c0_i32_0 = arith.constant 0 : i32
    %c0_i32_1 = arith.constant 0 : i32
    return %c0_i32, %c0_i32_0 : i32, i32
  }
  func.func @transform_7(%arg0: i32) -> (i32, i32) {
    %c0_i32 = arith.constant 0 : i32
    %c0_i32_0 = arith.constant 0 : i32
    %c0_i32_1 = arith.constant 0 : i32
    return %c0_i32, %c0_i32_0 : i32, i32
  }
  func.func @transform_8(%arg0: i32) -> (i32, i32) {
    %c0_i32 = arith.constant 0 : i32
    %c0_i32_0 = arith.constant 0 : i32
    %c0_i32_1 = arith.constant 0 : i32
    return %c0_i32, %c0_i32_0 : i32, i32
  }
  func.func @transform_9(%arg0: i32) -> (i32, i32) {
    %c0_i32 = arith.constant 0 : i32
    %c0_i32_0 = arith.constant 0 : i32
    %c0_i32_1 = arith.constant 0 : i32
    return %c0_i32, %c0_i32_0 : i32, i32
  }
  func.func @transform_10(%arg0: i32) -> (i32, i32) {
    %c0_i32 = arith.constant 0 : i32
    %c0_i32_0 = arith.constant 0 : i32
    return %c0_i32, %arg0 : i32, i32
  }
}

</mosaic_0001>

<llo_original>
// kernel: safty_forward.1
$region0: #{safty_forward.1}
  #allocation0 [shape = 'u32[]', space=smem, size = 0x4, offset = 0x4, fixed_abs, tag = 'smem constant byte address 0x4 - core index']
  #allocation1 [shape = 'u32[144,128]{1,0:T(1,128)}', space=vmem, size = 0x12000, scoped, tag = 'internal scratch']
  %s0 = inlined_call_operand.vmem [shape: f32[8,256], index: 0, kind: input, shape index: {}]
  %s1 = inlined_call_operand.vmem [shape: f32[160,8], index: 1, kind: input, shape index: {}]
  %s2 = inlined_call_operand.vmem [shape: f32[160,1], index: 2, kind: input, shape index: {}]
  %s3 = inlined_call_operand.vmem [shape: f32[160,160], index: 3, kind: input, shape index: {}]
  %s4 = inlined_call_operand.vmem [shape: f32[160,1], index: 4, kind: input, shape index: {}]
  %s5 = inlined_call_operand.vmem [shape: f32[40,160], index: 5, kind: input, shape index: {}]
  %s6 = inlined_call_operand.vmem [shape: f32[40,1], index: 6, kind: input, shape index: {}]
  %s7 = inlined_call_operand.vmem [shape: f32[8,32], index: 7, kind: input, shape index: {}]
  %s8 = inlined_call_operand.vmem [shape: f32[32,32], index: 8, kind: input, shape index: {}]
  %s9 = inlined_call_operand.vmem [shape: f32[32,1], index: 9, kind: input, shape index: {}]
  %s10 = inlined_call_operand.vmem [shape: f32[40,256], index: 10, kind: output, shape index: {}]
  %s11 = sld [smem:[#allocation0]]
  $region107: #{safty_forward.1} parent=0
    _
  %s13 = ssub.s32 1, %s11
  %s14 = scalar_select 0, %s13, %s11
  $region1: #{safty_forward.1} parent=0
    #allocation2 [shape = 'u8[40960]{0}', space=vmem, size = 0xa000, scoped, tag = 'output window, operand 0']
    loop: start=0, step=1, limit=4
    $region2: #{safty_forward.1} parent=1 // loop_pre_header
      _
    $region3: #{safty_forward.1} parent=1 // loop_header
      %s16 = sphi 0, %s20
      %p17 = scmp.ge.s32.totalorder %s16, 4
      %s26 = sphi 0, %s28
      %s29 = sphi 0, %s26
      %s30 = sphi 0, %s29
      %s46 = sphi 0, %s30
      %s50 = sphi 0, %s50
      %s52 = sphi 0, %s50
      %s53 = sphi 0, %s52
      %s67 = sphi 0, %s53
      %s71 = sphi 0, %s71
      %s73 = sphi 0, %s71
      %s74 = sphi 0, %s73
      %s88 = sphi 0, %s74
      %s92 = sphi 0, %s92
      %s94 = sphi 0, %s92
      %s95 = sphi 0, %s94
      %s109 = sphi 0, %s95
      %s113 = sphi 0, %s113
      %s115 = sphi 0, %s113
      %s116 = sphi 0, %s115
      %s130 = sphi 0, %s116
      %s134 = sphi 0, %s134
      %s136 = sphi 0, %s134
      %s137 = sphi 0, %s136
      %s151 = sphi 0, %s137
      %s155 = sphi 0, %s155
      %s157 = sphi 0, %s155
      %s158 = sphi 0, %s157
      %s172 = sphi 0, %s158
      %s176 = sphi 0, %s176
      %s178 = sphi 0, %s176
      %s179 = sphi 0, %s178
      %s193 = sphi 0, %s179
      %s197 = sphi 0, %s197
      %s199 = sphi 0, %s197
      %s200 = sphi 0, %s199
      %s214 = sphi 0, %s200
      %s218 = sphi 0, %s218
      %s220 = sphi 0, %s218
      %s221 = sphi 0, %s220
      %s235 = sphi 0, %s221
      %s241 = sphi 0, %s243
      %s244 = sphi 0, %s241
      %s245 = sphi 0, %s244
      %s261 = sphi 0, %s245
    $region4: #{safty_forward.1} parent=1 // loop_header_branch
      %19 = sbr.rel (%p17) target = $region8
    $region5: #{safty_forward.1} parent=1 // loop_body
      %s21 = ssub.s32 %s16, 1
      %s22 = ssub.s32 %s16, 2
      %s23 = sadd.s32 %s16, 1
      %s24 = ssub.s32 %s16, %s23
      %p25 = scmp.eq.s32.totalorder %s24, 0
      %s27 = sadd.s32 %s26, 1
      %s28 = scalar_select %p25, %s26, %s27
      %p31 = pneg %p25
      %p32 = scmp.eq.s32.totalorder %s16, 1
      %p33 = por %p31, %p32
      %p34 = scmp.ne.s32.totalorder %s26, %s29
      %p35 = scmp.eq.s32.totalorder %s16, 0
      %p36 = por %p34, %p35
      %p37 = scmp.ne.s32.totalorder %s26, %s29
      %p38 = scmp.eq.s32.totalorder %s21, 1
      %p39 = por %p37, %p38
      %p40 = scmp.ne.s32.totalorder %s29, %s30
      %p41 = scmp.eq.s32.totalorder %s21, 0
      %p42 = por %p40, %p41
      %p43 = scmp.ne.s32.totalorder %s29, %s30
      %p44 = scmp.eq.s32.totalorder %s22, 1
      %p45 = por %p43, %p44
      %p47 = scmp.ne.s32.totalorder %s30, %s46
      %p48 = scmp.eq.s32.totalorder %s22, 0
      %p49 = por %p47, %p48
      %s51 = sadd.s32 %s50, 1
      %p54 = scmp.eq.s32.totalorder %s16, 1
      %p55 = scmp.ne.s32.totalorder %s50, %s52
      %p56 = scmp.eq.s32.totalorder %s16, 0
      %p57 = por %p55, %p56
      %p58 = scmp.ne.s32.totalorder %s50, %s52
      %p59 = scmp.eq.s32.totalorder %s21, 1
      %p60 = por %p58, %p59
      %p61 = scmp.ne.s32.totalorder %s52, %s53
      %p62 = scmp.eq.s32.totalorder %s21, 0
      %p63 = por %p61, %p62
      %p64 = scmp.ne.s32.totalorder %s52, %s53
      %p65 = scmp.eq.s32.totalorder %s22, 1
      %p66 = por %p64, %p65
      %p68 = scmp.ne.s32.totalorder %s53, %s67
      %p69 = scmp.eq.s32.totalorder %s22, 0
      %p70 = por %p68, %p69
      %s72 = sadd.s32 %s71, 1
      %p75 = scmp.eq.s32.totalorder %s16, 1
      %p76 = scmp.ne.s32.totalorder %s71, %s73
      %p77 = scmp.eq.s32.totalorder %s16, 0
      %p78 = por %p76, %p77
      %p79 = scmp.ne.s32.totalorder %s71, %s73
      %p80 = scmp.eq.s32.totalorder %s21, 1
      %p81 = por %p79, %p80
      %p82 = scmp.ne.s32.totalorder %s73, %s74
      %p83 = scmp.eq.s32.totalorder %s21, 0
      %p84 = por %p82, %p83
      %p85 = scmp.ne.s32.totalorder %s73, %s74
      %p86 = scmp.eq.s32.totalorder %s22, 1
      %p87 = por %p85, %p86
      %p89 = scmp.ne.s32.totalorder %s74, %s88
      %p90 = scmp.eq.s32.totalorder %s22, 0
      %p91 = por %p89, %p90
      %s93 = sadd.s32 %s92, 1
      %p96 = scmp.eq.s32.totalorder %s16, 1
      %p97 = scmp.ne.s32.totalorder %s92, %s94
      %p98 = scmp.eq.s32.totalorder %s16, 0
      %p99 = por %p97, %p98
      %p100 = scmp.ne.s32.totalorder %s92, %s94
      %p101 = scmp.eq.s32.totalorder %s21, 1
      %p102 = por %p100, %p101
      %p103 = scmp.ne.s32.totalorder %s94, %s95
      %p104 = scmp.eq.s32.totalorder %s21, 0
      %p105 = por %p103, %p104
      %p106 = scmp.ne.s32.totalorder %s94, %s95
      %p107 = scmp.eq.s32.totalorder %s22, 1
      %p108 = por %p106, %p107
      %p110 = scmp.ne.s32.totalorder %s95, %s109
      %p111 = scmp.eq.s32.totalorder %s22, 0
      %p112 = por %p110, %p111
      %s114 = sadd.s32 %s113, 1
      %p117 = scmp.eq.s32.totalorder %s16, 1
      %p118 = scmp.ne.s32.totalorder %s113, %s115
      %p119 = scmp.eq.s32.totalorder %s16, 0
      %p120 = por %p118, %p119
      %p121 = scmp.ne.s32.totalorder %s113, %s115
      %p122 = scmp.eq.s32.totalorder %s21, 1
      %p123 = por %p121, %p122
      %p124 = scmp.ne.s32.totalorder %s115, %s116
      %p125 = scmp.eq.s32.totalorder %s21, 0
      %p126 = por %p124, %p125
      %p127 = scmp.ne.s32.totalorder %s115, %s116
      %p128 = scmp.eq.s32.totalorder %s22, 1
      %p129 = por %p127, %p128
      %p131 = scmp.ne.s32.totalorder %s116, %s130
      %p132 = scmp.eq.s32.totalorder %s22, 0
      %p133 = por %p131, %p132
      %s135 = sadd.s32 %s134, 1
      %p138 = scmp.eq.s32.totalorder %s16, 1
      %p139 = scmp.ne.s32.totalorder %s134, %s136
      %p140 = scmp.eq.s32.totalorder %s16, 0
      %p141 = por %p139, %p140
      %p142 = scmp.ne.s32.totalorder %s134, %s136
      %p143 = scmp.eq.s32.totalorder %s21, 1
      %p144 = por %p142, %p143
      %p145 = scmp.ne.s32.totalorder %s136, %s137
      %p146 = scmp.eq.s32.totalorder %s21, 0
      %p147 = por %p145, %p146
      %p148 = scmp.ne.s32.totalorder %s136, %s137
      %p149 = scmp.eq.s32.totalorder %s22, 1
      %p150 = por %p148, %p149
      %p152 = scmp.ne.s32.totalorder %s137, %s151
      %p153 = scmp.eq.s32.totalorder %s22, 0
      %p154 = por %p152, %p153
      %s156 = sadd.s32 %s155, 1
      %p159 = scmp.eq.s32.totalorder %s16, 1
      %p160 = scmp.ne.s32.totalorder %s155, %s157
      %p161 = scmp.eq.s32.totalorder %s16, 0
      %p162 = por %p160, %p161
      %p163 = scmp.ne.s32.totalorder %s155, %s157
      %p164 = scmp.eq.s32.totalorder %s21, 1
      %p165 = por %p163, %p164
      %p166 = scmp.ne.s32.totalorder %s157, %s158
      %p167 = scmp.eq.s32.totalorder %s21, 0
      %p168 = por %p166, %p167
      %p169 = scmp.ne.s32.totalorder %s157, %s158
      %p170 = scmp.eq.s32.totalorder %s22, 1
      %p171 = por %p169, %p170
      %p173 = scmp.ne.s32.totalorder %s158, %s172
      %p174 = scmp.eq.s32.totalorder %s22, 0
      %p175 = por %p173, %p174
      %s177 = sadd.s32 %s176, 1
      %p180 = scmp.eq.s32.totalorder %s16, 1
      %p181 = scmp.ne.s32.totalorder %s176, %s178
      %p182 = scmp.eq.s32.totalorder %s16, 0
      %p183 = por %p181, %p182
      %p184 = scmp.ne.s32.totalorder %s176, %s178
      %p185 = scmp.eq.s32.totalorder %s21, 1
      %p186 = por %p184, %p185
      %p187 = scmp.ne.s32.totalorder %s178, %s179
      %p188 = scmp.eq.s32.totalorder %s21, 0
      %p189 = por %p187, %p188
      %p190 = scmp.ne.s32.totalorder %s178, %s179
      %p191 = scmp.eq.s32.totalorder %s22, 1
      %p192 = por %p190, %p191
      %p194 = scmp.ne.s32.totalorder %s179, %s193
      %p195 = scmp.eq.s32.totalorder %s22, 0
      %p196 = por %p194, %p195
      %s198 = sadd.s32 %s197, 1
      %p201 = scmp.eq.s32.totalorder %s16, 1
      %p202 = scmp.ne.s32.totalorder %s197, %s199
      %p203 = scmp.eq.s32.totalorder %s16, 0
      %p204 = por %p202, %p203
      %p205 = scmp.ne.s32.totalorder %s197, %s199
      %p206 = scmp.eq.s32.totalorder %s21, 1
      %p207 = por %p205, %p206
      %p208 = scmp.ne.s32.totalorder %s199, %s200
      %p209 = scmp.eq.s32.totalorder %s21, 0
      %p210 = por %p208, %p209
      %p211 = scmp.ne.s32.totalorder %s199, %s200
      %p212 = scmp.eq.s32.totalorder %s22, 1
      %p213 = por %p211, %p212
      %p215 = scmp.ne.s32.totalorder %s200, %s214
      %p216 = scmp.eq.s32.totalorder %s22, 0
      %p217 = por %p215, %p216
      %s219 = sadd.s32 %s218, 1
      %p222 = scmp.eq.s32.totalorder %s16, 1
      %p223 = scmp.ne.s32.totalorder %s218, %s220
      %p224 = scmp.eq.s32.totalorder %s16, 0
      %p225 = por %p223, %p224
      %p226 = scmp.ne.s32.totalorder %s218, %s220
      %p227 = scmp.eq.s32.totalorder %s21, 1
      %p228 = por %p226, %p227
      %p229 = scmp.ne.s32.totalorder %s220, %s221
      %p230 = scmp.eq.s32.totalorder %s21, 0
      %p231 = por %p229, %p230
      %p232 = scmp.ne.s32.totalorder %s220, %s221
      %p233 = scmp.eq.s32.totalorder %s22, 1
      %p234 = por %p232, %p233
      %p236 = scmp.ne.s32.totalorder %s221, %s235
      %p237 = scmp.eq.s32.totalorder %s22, 0
      %p238 = por %p236, %p237
      %s239 = ssub.s32 %s16, %s23
      %p240 = scmp.eq.s32.totalorder %s239, 0
      %s242 = sadd.s32 %s241, 1
      %s243 = scalar_select %p240, %s241, %s242
      %p246 = pneg %p240
      %p247 = scmp.eq.s32.totalorder %s16, 1
      %p248 = por %p246, %p247
      %p249 = scmp.ne.s32.totalorder %s241, %s244
      %p250 = scmp.eq.s32.totalorder %s16, 0
      %p251 = por %p249, %p250
      %p252 = scmp.ne.s32.totalorder %s241, %s244
      %p253 = scmp.eq.s32.totalorder %s21, 1
      %p254 = por %p252, %p253
      %p255 = scmp.ne.s32.totalorder %s244, %s245
      %p256 = scmp.eq.s32.totalorder %s21, 0
      %p257 = por %p255, %p256
      %p258 = scmp.ne.s32.totalorder %s244, %s245
      %p259 = scmp.eq.s32.totalorder %s22, 1
      %p260 = por %p258, %p259
      %p262 = scmp.ne.s32.totalorder %s245, %s261
      %p263 = scmp.eq.s32.totalorder %s22, 0
      %p264 = por %p262, %p263
      %p265 = scmp.le.s32.totalorder 1, %s16
      %p266 = scmp.lt.s32.totalorder %s16, 3
      %p267 = pnand %p265, %p266
      %p268 = pneg %p267
      // Predicated region
      $region9: #{safty_forward.1} parent=5 // pred_check
        _
      $region10: #{safty_forward.1} parent=5 // pred_check_branch
        %270 = sbr.rel (%p267) target = $region12
      $region11: #{safty_forward.1} parent=5 // pred_region
        %s271 = ssub.s32 %s16, 1
        // Predicated region
        $region13: #{safty_forward.1} parent=11 // pred_check
          %p272 = pneg %p63
        $region14: #{safty_forward.1} parent=11 // pred_check_branch
          %274 = sbr.rel (%p272) target = $region16
        $region15: #{safty_forward.1} parent=11 // pred_region
          _
        $region16: #{safty_forward.1} parent=11 // pred_fallthru
          _
        // Predicated region
        $region17: #{safty_forward.1} parent=11 // pred_check
          %p275 = pneg %p84
        $region18: #{safty_forward.1} parent=11 // pred_check_branch
          %277 = sbr.rel (%p275) target = $region20
        $region19: #{safty_forward.1} parent=11 // pred_region
          _
        $region20: #{safty_forward.1} parent=11 // pred_fallthru
          _
        // Predicated region
        $region21: #{safty_forward.1} parent=11 // pred_check
          %p278 = pneg %p105
        $region22: #{safty_forward.1} parent=11 // pred_check_branch
          %280 = sbr.rel (%p278) target = $region24
        $region23: #{safty_forward.1} parent=11 // pred_region
          _
        $region24: #{safty_forward.1} parent=11 // pred_fallthru
          _
        // Predicated region
        $region25: #{safty_forward.1} parent=11 // pred_check
          %p281 = pneg %p126
        $region26: #{safty_forward.1} parent=11 // pred_check_branch
          %283 = sbr.rel (%p281) target = $region28
        $region27: #{safty_forward.1} parent=11 // pred_region
          _
        $region28: #{safty_forward.1} parent=11 // pred_fallthru
          _
        // Predicated region
        $region29: #{safty_forward.1} parent=11 // pred_check
          %p284 = pneg %p147
        $region30: #{safty_forward.1} parent=11 // pred_check_branch
          %286 = sbr.rel (%p284) target = $region32
        $region31: #{safty_forward.1} parent=11 // pred_region
          _
        $region32: #{safty_forward.1} parent=11 // pred_fallthru
          _
        // Predicated region
        $region33: #{safty_forward.1} parent=11 // pred_check
          %p287 = pneg %p168
        $region34: #{safty_forward.1} parent=11 // pred_check_branch
          %289 = sbr.rel (%p287) target = $region36
        $region35: #{safty_forward.1} parent=11 // pred_region
          _
        $region36: #{safty_forward.1} parent=11 // pred_fallthru
          _
        // Predicated region
        $region37: #{safty_forward.1} parent=11 // pred_check
          %p290 = pneg %p189
        $region38: #{safty_forward.1} parent=11 // pred_check_branch
          %292 = sbr.rel (%p290) target = $region40
        $region39: #{safty_forward.1} parent=11 // pred_region
          _
        $region40: #{safty_forward.1} parent=11 // pred_fallthru
          _
        // Predicated region
        $region41: #{safty_forward.1} parent=11 // pred_check
          %p293 = pneg %p210
        $region42: #{safty_forward.1} parent=11 // pred_check_branch
          %295 = sbr.rel (%p293) target = $region44
        $region43: #{safty_forward.1} parent=11 // pred_region
          _
        $region44: #{safty_forward.1} parent=11 // pred_fallthru
          _
        // Predicated region
        $region45: #{safty_forward.1} parent=11 // pred_check
          %p296 = pneg %p231
        $region46: #{safty_forward.1} parent=11 // pred_check_branch
          %298 = sbr.rel (%p296) target = $region48
        $region47: #{safty_forward.1} parent=11 // pred_region
          _
        $region48: #{safty_forward.1} parent=11 // pred_fallthru
          _
      $region12: #{safty_forward.1} parent=5 // pred_fallthru
        _
      %p299 = scmp.lt.s32.totalorder %s16, 2
      // Predicated region
      $region49: #{safty_forward.1} parent=5 // pred_check
        %p300 = pneg %p299
      $region50: #{safty_forward.1} parent=5 // pred_check_branch
        %302 = sbr.rel (%p300) target = $region52
      $region51: #{safty_forward.1} parent=5 // pred_region
        // Predicated region
        $region53: #{safty_forward.1} parent=51 // pred_check
          %p303 = pneg %p36
        $region54: #{safty_forward.1} parent=51 // pred_check_branch
          %305 = sbr.rel (%p303) target = $region56
        $region55: #{safty_forward.1} parent=51 // pred_region
          %p306 = scmp.lt.s32.totalorder %s16, 1
          %s307 = scalar_select %p306, %s16, 1
          %s308 = smul.addr %s307, 8
          %s309 = scalar_lea.vmem %s0, %s308
        $region56: #{safty_forward.1} parent=51 // pred_fallthru
          _
      $region52: #{safty_forward.1} parent=5 // pred_fallthru
        _
      %p310 = scmp.le.s32.totalorder 1, %s16
      %p311 = scmp.lt.s32.totalorder %s16, 3
      %p312 = pnand %p310, %p311
      %p313 = pneg %p312
      // Predicated region
      $region57: #{safty_forward.1} parent=5 // pred_check
        _
      $region58: #{safty_forward.1} parent=5 // pred_check_branch
        %315 = sbr.rel (%p312) target = $region60
      $region59: #{safty_forward.1} parent=5 // pred_region
        %s316 = ssub.s32 %s16, 1
        %p317 = scmp.lt.s32.totalorder %s21, 1
        %s318 = scalar_select %p317, %s21, 1
        %s319 = smul.addr %s318, 8
        %s320 = scalar_lea.vmem %s0, %s319
        %p321 = pneg %p42
        %p322 = pneg %p39
        %p323 = pneg %p63
        %p324 = pneg %p60
        %p325 = pneg %p84
        %p326 = pneg %p81
        %p327 = pneg %p105
        %p328 = pneg %p102
        %p329 = pneg %p126
        %p330 = pneg %p123
        %p331 = pneg %p147
        %p332 = pneg %p144
        %p333 = pneg %p168
        %p334 = pneg %p165
        %p335 = pneg %p189
        %p336 = pneg %p186
        %p337 = pneg %p210
        %p338 = pneg %p207
        %p339 = pneg %p231
        %p340 = pneg %p228
        %p341 = pneg %p257
        %p342 = pneg %p254
        %s343 = sand.u32 %s244, 1
        %s344 = sand.u32 %s244, 1
        %s345 = smul.addr %s344, 40
        %s346 = scalar_lea.vmem [#allocation2], %s345
        %p347 = scmp.lt.s32.totalorder %s21, 1
        %s348 = scalar_select %p347, %s21, 1
        %s349 = smul.addr %s348, 8
        %s350 = scalar_lea.vmem %s0, %s349
        %v351 = vld [vmem:[%s350] sm:$0xff]
        %v352 = vld [vmem:[%s1] sm:$0xff]
        %v353 = vld [vmem:[%s1 + $0x8] sm:$0xff]
        %v354 = vld [vmem:[%s1 + $0x10] sm:$0xff]
        %v355 = vld [vmem:[%s1 + $0x18] sm:$0xff]
        %v356 = vld [vmem:[%s1 + $0x20] sm:$0xff]
        %v357 = vld [vmem:[%s1 + $0x28] sm:$0xff]
        %v358 = vld [vmem:[%s1 + $0x30] sm:$0xff]
        %v359 = vld [vmem:[%s1 + $0x38] sm:$0xff]
        %v360 = vld [vmem:[%s1 + $0x40] sm:$0xff]
        %v361 = vld [vmem:[%s1 + $0x48] sm:$0xff]
        %v362 = vld [vmem:[%s1 + $0x50] sm:$0xff]
        %v363 = vld [vmem:[%s1 + $0x58] sm:$0xff]
        %v364 = vld [vmem:[%s1 + $0x60] sm:$0xff]
        %v365 = vld [vmem:[%s1 + $0x68] sm:$0xff]
        %v366 = vld [vmem:[%s1 + $0x70] sm:$0xff]
        %v367 = vld [vmem:[%s1 + $0x78] sm:$0xff]
        %v368 = vld [vmem:[%s1 + $0x80] sm:$0xff]
        %v369 = vld [vmem:[%s1 + $0x88] sm:$0xff]
        %v370 = vld [vmem:[%s1 + $0x90] sm:$0xff]
        %v371 = vld [vmem:[%s1 + $0x98] sm:$0xff]
        %v372 = vld [vmem:[%s2] sm:$0xff]
        %v373 = vld [vmem:[%s2 + $0x8] sm:$0xff]
        %v374 = vld [vmem:[%s2 + $0x10] sm:$0xff]
        %v375 = vld [vmem:[%s2 + $0x18] sm:$0xff]
        %v376 = vld [vmem:[%s2 + $0x20] sm:$0xff]
        %v377 = vld [vmem:[%s2 + $0x28] sm:$0xff]
        %v378 = vld [vmem:[%s2 + $0x30] sm:$0xff]
        %v379 = vld [vmem:[%s2 + $0x38] sm:$0xff]
        %v380 = vld [vmem:[%s2 + $0x40] sm:$0xff]
        %v381 = vld [vmem:[%s2 + $0x48] sm:$0xff]
        %v382 = vld [vmem:[%s2 + $0x50] sm:$0xff]
        %v383 = vld [vmem:[%s2 + $0x58] sm:$0xff]
        %v384 = vld [vmem:[%s2 + $0x60] sm:$0xff]
        %v385 = vld [vmem:[%s2 + $0x68] sm:$0xff]
        %v386 = vld [vmem:[%s2 + $0x70] sm:$0xff]
        %v387 = vld [vmem:[%s2 + $0x78] sm:$0xff]
        %v388 = vld [vmem:[%s2 + $0x80] sm:$0xff]
        %v389 = vld [vmem:[%s2 + $0x88] sm:$0xff]
        %v390 = vld [vmem:[%s2 + $0x90] sm:$0xff]
        %v391 = vld [vmem:[%s2 + $0x98] sm:$0xff]
        %393 = vset.pattern.permute.xlu0 0
        %394 = vperm.xlu0 %393, %v372
        %v395 = vpop.permute.xlu0 %394
        %398 = vset.pattern.permute.xlu0 0
        %399 = vperm.xlu0 %398, %v373
        %v400 = vpop.permute.xlu0 %399
        %403 = vset.pattern.permute.xlu0 0
        %404 = vperm.xlu0 %403, %v374
        %v405 = vpop.permute.xlu0 %404
        %408 = vset.pattern.permute.xlu0 0
        %409 = vperm.xlu0 %408, %v375
        %v410 = vpop.permute.xlu0 %409
        %413 = vset.pattern.permute.xlu0 0
        %414 = vperm.xlu0 %413, %v376
        %v415 = vpop.permute.xlu0 %414
        %418 = vset.pattern.permute.xlu0 0
        %419 = vperm.xlu0 %418, %v377
        %v420 = vpop.permute.xlu0 %419
        %423 = vset.pattern.permute.xlu0 0
        %424 = vperm.xlu0 %423, %v378
        %v425 = vpop.permute.xlu0 %424
        %428 = vset.pattern.permute.xlu0 0
        %429 = vperm.xlu0 %428, %v379
        %v430 = vpop.permute.xlu0 %429
        %433 = vset.pattern.permute.xlu0 0
        %434 = vperm.xlu0 %433, %v380
        %v435 = vpop.permute.xlu0 %434
        %438 = vset.pattern.permute.xlu0 0
        %439 = vperm.xlu0 %438, %v381
        %v440 = vpop.permute.xlu0 %439
        %443 = vset.pattern.permute.xlu0 0
        %444 = vperm.xlu0 %443, %v382
        %v445 = vpop.permute.xlu0 %444
        %448 = vset.pattern.permute.xlu0 0
        %449 = vperm.xlu0 %448, %v383
        %v450 = vpop.permute.xlu0 %449
        %453 = vset.pattern.permute.xlu0 0
        %454 = vperm.xlu0 %453, %v384
        %v455 = vpop.permute.xlu0 %454
        %458 = vset.pattern.permute.xlu0 0
        %459 = vperm.xlu0 %458, %v385
        %v460 = vpop.permute.xlu0 %459
        %463 = vset.pattern.permute.xlu0 0
        %464 = vperm.xlu0 %463, %v386
        %v465 = vpop.permute.xlu0 %464
        %468 = vset.pattern.permute.xlu0 0
        %469 = vperm.xlu0 %468, %v387
        %v470 = vpop.permute.xlu0 %469
        %473 = vset.pattern.permute.xlu0 0
        %474 = vperm.xlu0 %473, %v388
        %v475 = vpop.permute.xlu0 %474
        %478 = vset.pattern.permute.xlu0 0
        %479 = vperm.xlu0 %478, %v389
        %v480 = vpop.permute.xlu0 %479
        %483 = vset.pattern.permute.xlu0 0
        %484 = vperm.xlu0 %483, %v390
        %v485 = vpop.permute.xlu0 %484
        %488 = vset.pattern.permute.xlu0 0
        %489 = vperm.xlu0 %488, %v391
        %v490 = vpop.permute.xlu0 %489
        %vm492 = vcmask 64512
        %v494 = vsel %vm492, %v352, 0
        %v497 = vsel %vm492, %v353, 0
        %v500 = vsel %vm492, %v354, 0
        %v503 = vsel %vm492, %v355, 0
        %v506 = vsel %vm492, %v356, 0
        %v509 = vsel %vm492, %v357, 0
        %v512 = vsel %vm492, %v358, 0
        %v515 = vsel %vm492, %v359, 0
        %v518 = vsel %vm492, %v360, 0
        %v521 = vsel %vm492, %v361, 0
        %v524 = vsel %vm492, %v362, 0
        %v527 = vsel %vm492, %v363, 0
        %v530 = vsel %vm492, %v364, 0
        %v533 = vsel %vm492, %v365, 0
        %v536 = vsel %vm492, %v366, 0
        %v539 = vsel %vm492, %v367, 0
        %v542 = vsel %vm492, %v368, 0
        %v545 = vsel %vm492, %v369, 0
        %v548 = vsel %vm492, %v370, 0
        %v551 = vsel %vm492, %v371, 0
        %553 = vmatprep.subr.mxu0 0.0
        %554 = vmatpush1.msra.mxu0 %v351
        %555 = vmatprep.subr.mxu0 0.0
        %556 = vmatpush1.msra.mxu0 0.0
        %557 = vmatprep.subr.mxu0 0.0
        %558 = vmatpush1.msra.mxu0 0.0
        %559 = vmatprep.subr.mxu0 0.0
        %560 = vmatpush1.msra.mxu0 0.0
        %561 = vmatprep.subr.mxu0 0.0
        %562 = vmatpush1.msra.mxu0 0.0
        %563 = vmatprep.subr.mxu0 0.0
        %564 = vmatpush1.msra.mxu0 0.0
        %565 = vmatprep.subr.mxu0 0.0
        %566 = vmatpush1.msra.mxu0 0.0
        %567 = vmatprep.subr.mxu0 0.0
        %568 = vmatpush1.msra.mxu0 0.0
        %569 = vmatprep.subr.mxu0 0.0
        %570 = vmatpush1.msra.mxu0 0.0
        %571 = vmatprep.subr.mxu0 0.0
        %572 = vmatpush1.msra.mxu0 0.0
        %573 = vmatprep.subr.mxu0 0.0
        %574 = vmatpush1.msra.mxu0 0.0
        %575 = vmatprep.subr.mxu0 0.0
        %576 = vmatpush1.msra.mxu0 0.0
        %577 = vmatprep.subr.mxu0 0.0
        %578 = vmatpush1.msra.mxu0 0.0
        %579 = vmatprep.subr.mxu0 0.0
        %580 = vmatpush1.msra.mxu0 0.0
        %581 = vmatprep.subr.mxu0 0.0
        %582 = vmatpush1.msra.mxu0 0.0
        %583 = vmatprep.subr.mxu0 0.0
        %584 = vmatpush1.msra.mxu0 0.0
        %585 = vmatprep.subr.mxu0 0.0
        %586 = vmatpush1.msra.mxu0 0.0
        %587 = vmatprep.subr.mxu0 0.0
        %588 = vmatpush1.msra.mxu0 0.0
        %589 = vmatprep.subr.mxu0 0.0
        %590 = vmatpush1.msra.mxu0 0.0
        %591 = vmatprep.subr.mxu0 0.0
        %592 = vmatpush1.msra.mxu0 0.0
        %593 = vmatprep.subr.mxu0 0.0
        %594 = vmatpush1.msra.mxu0 0.0
        %595 = vmatprep.subr.mxu0 0.0
        %596 = vmatpush1.msra.mxu0 0.0
        %597 = vmatprep.subr.mxu0 0.0
        %598 = vmatpush1.msra.mxu0 0.0
        %599 = vmatprep.subr.mxu0 0.0
        %600 = vmatpush1.msra.mxu0 0.0
        %601 = vmatprep.subr.mxu0 0.0
        %602 = vmatpush1.msra.mxu0 0.0
        %603 = vmatprep.subr.mxu0 0.0
        %604 = vmatpush1.msra.mxu0 0.0
        %605 = vmatprep.subr.mxu0 0.0
        %606 = vmatpush1.msra.mxu0 0.0
        %607 = vmatprep.subr.mxu0 0.0
        %608 = vmatpush1.msra.mxu0 0.0
        %609 = vmatprep.subr.mxu0 0.0
        %610 = vmatpush1.msra.mxu0 0.0
        %611 = vmatprep.subr.mxu0 0.0
        %612 = vmatpush1.msra.mxu0 0.0
        %613 = vmatprep.subr.mxu0 0.0
        %614 = vmatpush1.msra.mxu0 0.0
        %615 = vmatprep.subr.mxu0 0.0
        %616 = vmatpush1.msra.mxu0 0.0
        %617 = vmatprep.mubr.f32.mxu0 0.0
        %618 = vmatmul.mubr.f32.gmra.mrb[0].mxu0 %v494
        %v619 = vpop.f32.mrb[0].mxu0
        %v620 = vadd.f32 %v395, %v619
        %v621 = vpop.f32.mrb[0].mxu0
        %622 = vmatprep.mubr.f32.mxu0 0.0
        %623 = vmatmul.mubr.f32.gmra.mrb[0].mxu0 %v497
        %v624 = vpop.f32.mrb[0].mxu0
        %v625 = vadd.f32 %v400, %v624
        %v626 = vpop.f32.mrb[0].mxu0
        %627 = vmatprep.mubr.f32.mxu0 0.0
        %628 = vmatmul.mubr.f32.gmra.mrb[0].mxu0 %v500
        %v629 = vpop.f32.mrb[0].mxu0
        %v630 = vadd.f32 %v405, %v629
        %v631 = vpop.f32.mrb[0].mxu0
        %632 = vmatprep.mubr.f32.mxu0 0.0
        %633 = vmatmul.mubr.f32.gmra.mrb[0].mxu0 %v503
        %v634 = vpop.f32.mrb[0].mxu0
        %v635 = vadd.f32 %v410, %v634
        %v636 = vpop.f32.mrb[0].mxu0
        %637 = vmatprep.mubr.f32.mxu0 0.0
        %638 = vmatmul.mubr.f32.gmra.mrb[0].mxu0 %v506
        %v639 = vpop.f32.mrb[0].mxu0
        %v640 = vadd.f32 %v415, %v639
        %v641 = vpop.f32.mrb[0].mxu0
        %642 = vmatprep.mubr.f32.mxu0 0.0
        %643 = vmatmul.mubr.f32.gmra.mrb[0].mxu0 %v509
        %v644 = vpop.f32.mrb[0].mxu0
        %v645 = vadd.f32 %v420, %v644
        %v646 = vpop.f32.mrb[0].mxu0
        %647 = vmatprep.mubr.f32.mxu0 0.0
        %648 = vmatmul.mubr.f32.gmra.mrb[0].mxu0 %v512
        %v649 = vpop.f32.mrb[0].mxu0
        %v650 = vadd.f32 %v425, %v649
        %v651 = vpop.f32.mrb[0].mxu0
        %652 = vmatprep.mubr.f32.mxu0 0.0
        %653 = vmatmul.mubr.f32.gmra.mrb[0].mxu0 %v515
        %v654 = vpop.f32.mrb[0].mxu0
        %v655 = vadd.f32 %v430, %v654
        %v656 = vpop.f32.mrb[0].mxu0
        %657 = vmatprep.mubr.f32.mxu0 0.0
        %658 = vmatmul.mubr.f32.gmra.mrb[0].mxu0 %v518
        %v659 = vpop.f32.mrb[0].mxu0
        %v660 = vadd.f32 %v435, %v659
        %v661 = vpop.f32.mrb[0].mxu0
        %662 = vmatprep.mubr.f32.mxu0 0.0
        %663 = vmatmul.mubr.f32.gmra.mrb[0].mxu0 %v521
        %v664 = vpop.f32.mrb[0].mxu0
        %v665 = vadd.f32 %v440, %v664
        %v666 = vpop.f32.mrb[0].mxu0
        %667 = vmatprep.mubr.f32.mxu0 0.0
        %668 = vmatmul.mubr.f32.gmra.mrb[0].mxu0 %v524
        %v669 = vpop.f32.mrb[0].mxu0
        %v670 = vadd.f32 %v445, %v669
        %v671 = vpop.f32.mrb[0].mxu0
        %672 = vmatprep.mubr.f32.mxu0 0.0
        %673 = vmatmul.mubr.f32.gmra.mrb[0].mxu0 %v527
        %v674 = vpop.f32.mrb[0].mxu0
        %v675 = vadd.f32 %v450, %v674
        %v676 = vpop.f32.mrb[0].mxu0
        %677 = vmatprep.mubr.f32.mxu0 0.0
        %678 = vmatmul.mubr.f32.gmra.mrb[0].mxu0 %v530
        %v679 = vpop.f32.mrb[0].mxu0
        %v680 = vadd.f32 %v455, %v679
        %v681 = vpop.f32.mrb[0].mxu0
        %682 = vmatprep.mubr.f32.mxu0 0.0
        %683 = vmatmul.mubr.f32.gmra.mrb[0].mxu0 %v533
        %v684 = vpop.f32.mrb[0].mxu0
        %v685 = vadd.f32 %v460, %v684
        %v686 = vpop.f32.mrb[0].mxu0
        %687 = vmatprep.mubr.f32.mxu0 0.0
        %688 = vmatmul.mubr.f32.gmra.mrb[0].mxu0 %v536
        %v689 = vpop.f32.mrb[0].mxu0
        %v690 = vadd.f32 %v465, %v689
        %v691 = vpop.f32.mrb[0].mxu0
        %692 = vmatprep.mubr.f32.mxu0 0.0
        %693 = vmatmul.mubr.f32.gmra.mrb[0].mxu0 %v539
        %v694 = vpop.f32.mrb[0].mxu0
        %v695 = vadd.f32 %v470, %v694
        %v696 = vpop.f32.mrb[0].mxu0
        %697 = vmatprep.mubr.f32.mxu0 0.0
        %698 = vmatmul.mubr.f32.gmra.mrb[0].mxu0 %v542
        %v699 = vpop.f32.mrb[0].mxu0
        %v700 = vadd.f32 %v475, %v699
        %v701 = vpop.f32.mrb[0].mxu0
        %702 = vmatprep.mubr.f32.mxu0 0.0
        %703 = vmatmul.mubr.f32.gmra.mrb[0].mxu0 %v545
        %v704 = vpop.f32.mrb[0].mxu0
        %v705 = vadd.f32 %v480, %v704
        %v706 = vpop.f32.mrb[0].mxu0
        %707 = vmatprep.mubr.f32.mxu0 0.0
        %708 = vmatmul.mubr.f32.gmra.mrb[0].mxu0 %v548
        %v709 = vpop.f32.mrb[0].mxu0
        %v710 = vadd.f32 %v485, %v709
        %v711 = vpop.f32.mrb[0].mxu0
        %712 = vmatprep.mubr.f32.mxu0 0.0
        %713 = vmatmul.mubr.f32.gmra.mrb[0].mxu0 %v551
        %v714 = vpop.f32.mrb[0].mxu0
        %v715 = vadd.f32 %v490, %v714
        %v716 = vpop.f32.mrb[0].mxu0
        %717 = vdwg.mxu0
        %v718 = vmax.f32 %v620, 0.0
        %v719 = vmax.f32 %v625, 0.0
        %v720 = vmax.f32 %v630, 0.0
        %v721 = vmax.f32 %v635, 0.0
        %v722 = vmax.f32 %v640, 0.0
        %v723 = vmax.f32 %v645, 0.0
        %v724 = vmax.f32 %v650, 0.0
        %v725 = vmax.f32 %v655, 0.0
        %v726 = vmax.f32 %v660, 0.0
        %v727 = vmax.f32 %v665, 0.0
        %v728 = vmax.f32 %v670, 0.0
        %v729 = vmax.f32 %v675, 0.0
        %v730 = vmax.f32 %v680, 0.0
        %v731 = vmax.f32 %v685, 0.0
        %v732 = vmax.f32 %v690, 0.0
        %v733 = vmax.f32 %v695, 0.0
        %v734 = vmax.f32 %v700, 0.0
        %v735 = vmax.f32 %v705, 0.0
        %v736 = vmax.f32 %v710, 0.0
        %v737 = vmax.f32 %v715, 0.0
        %v738 = vld [vmem:[%s3] sm:$0xff]
        %v739 = vld [vmem:[%s3 + $0x8] sm:$0xff]
        %v740 = vld [vmem:[%s3 + $0x10] sm:$0xff]
        %v741 = vld [vmem:[%s3 + $0x18] sm:$0xff]
        %v742 = vld [vmem:[%s3 + $0x20] sm:$0xff]
        %v743 = vld [vmem:[%s3 + $0x28] sm:$0xff]
        %v744 = vld [vmem:[%s3 + $0x30] sm:$0xff]
        %v745 = vld [vmem:[%s3 + $0x38] sm:$0xff]
        %v746 = vld [vmem:[%s3 + $0x40] sm:$0xff]
        %v747 = vld [vmem:[%s3 + $0x48] sm:$0xff]
        %v748 = vld [vmem:[%s3 + $0x50] sm:$0xff]
        %v749 = vld [vmem:[%s3 + $0x58] sm:$0xff]
        %v750 = vld [vmem:[%s3 + $0x60] sm:$0xff]
        %v751 = vld [vmem:[%s3 + $0x68] sm:$0xff]
        %v752 = vld [vmem:[%s3 + $0x70] sm:$0xff]
        %v753 = vld [vmem:[%s3 + $0x78] sm:$0xff]
        %v754 = vld [vmem:[%s3 + $0x80] sm:$0xff]
        %v755 = vld [vmem:[%s3 + $0x88] sm:$0xff]
        %v756 = vld [vmem:[%s3 + $0x90] sm:$0xff]
        %v757 = vld [vmem:[%s3 + $0x98] sm:$0xff]
        %v758 = vld [vmem:[%s3 + $0xa0] sm:$0xff]
        %v759 = vld [vmem:[%s3 + $0xa8] sm:$0xff]
        %v760 = vld [vmem:[%s3 + $0xb0] sm:$0xff]
        %v761 = vld [vmem:[%s3 + $0xb8] sm:$0xff]
        %v762 = vld [vmem:[%s3 + $0xc0] sm:$0xff]
        %v763 = vld [vmem:[%s3 + $0xc8] sm:$0xff]
        %v764 = vld [vmem:[%s3 + $0xd0] sm:$0xff]
        %v765 = vld [vmem:[%s3 + $0xd8] sm:$0xff]
        %v766 = vld [vmem:[%s3 + $0xe0] sm:$0xff]
        %v767 = vld [vmem:[%s3 + $0xe8] sm:$0xff]
        %v768 = vld [vmem:[%s3 + $0xf0] sm:$0xff]
        %v769 = vld [vmem:[%s3 + $0xf8] sm:$0xff]
        %v770 = vld [vmem:[%s3 + $0x100] sm:$0xff]
        %v771 = vld [vmem:[%s3 + $0x108] sm:$0xff]
        %v772 = vld [vmem:[%s3 + $0x110] sm:$0xff]
        %v773 = vld [vmem:[%s3 + $0x118] sm:$0xff]
        %v774 = vld [vmem:[%s3 + $0x120] sm:$0xff]
        %v775 = vld [vmem:[%s3 + $0x128] sm:$0xff]
        %v776 = vld [vmem:[%s3 + $0x130] sm:$0xff]
        %v777 = vld [vmem:[%s3 + $0x138] sm:$0xff]
        %v778 = vld [vmem:[%s4] sm:$0xff]
        %v779 = vld [vmem:[%s4 + $0x8] sm:$0xff]
        %v780 = vld [vmem:[%s4 + $0x10] sm:$0xff]
        %v781 = vld [vmem:[%s4 + $0x18] sm:$0xff]
        %v782 = vld [vmem:[%s4 + $0x20] sm:$0xff]
        %v783 = vld [vmem:[%s4 + $0x28] sm:$0xff]
        %v784 = vld [vmem:[%s4 + $0x30] sm:$0xff]
        %v785 = vld [vmem:[%s4 + $0x38] sm:$0xff]
        %v786 = vld [vmem:[%s4 + $0x40] sm:$0xff]
        %v787 = vld [vmem:[%s4 + $0x48] sm:$0xff]
        %v788 = vld [vmem:[%s4 + $0x50] sm:$0xff]
        %v789 = vld [vmem:[%s4 + $0x58] sm:$0xff]
        %v790 = vld [vmem:[%s4 + $0x60] sm:$0xff]
        %v791 = vld [vmem:[%s4 + $0x68] sm:$0xff]
        %v792 = vld [vmem:[%s4 + $0x70] sm:$0xff]
        %v793 = vld [vmem:[%s4 + $0x78] sm:$0xff]
        %v794 = vld [vmem:[%s4 + $0x80] sm:$0xff]
        %v795 = vld [vmem:[%s4 + $0x88] sm:$0xff]
        %v796 = vld [vmem:[%s4 + $0x90] sm:$0xff]
        %v797 = vld [vmem:[%s4 + $0x98] sm:$0xff]
        %799 = vset.pattern.permute.xlu0 0
        %800 = vperm.xlu0 %799, %v778
        %v801 = vpop.permute.xlu0 %800
        %804 = vset.pattern.permute.xlu0 0
        %805 = vperm.xlu0 %804, %v779
        %v806 = vpop.permute.xlu0 %805
        %809 = vset.pattern.permute.xlu0 0
        %810 = vperm.xlu0 %809, %v780
        %v811 = vpop.permute.xlu0 %810
        %814 = vset.pattern.permute.xlu0 0
        %815 = vperm.xlu0 %814, %v781
        %v816 = vpop.permute.xlu0 %815
        %819 = vset.pattern.permute.xlu0 0
        %820 = vperm.xlu0 %819, %v782
        %v821 = vpop.permute.xlu0 %820
        %824 = vset.pattern.permute.xlu0 0
        %825 = vperm.xlu0 %824, %v783
        %v826 = vpop.permute.xlu0 %825
        %829 = vset.pattern.permute.xlu0 0
        %830 = vperm.xlu0 %829, %v784
        %v831 = vpop.permute.xlu0 %830
        %834 = vset.pattern.permute.xlu0 0
        %835 = vperm.xlu0 %834, %v785
        %v836 = vpop.permute.xlu0 %835
        %839 = vset.pattern.permute.xlu0 0
        %840 = vperm.xlu0 %839, %v786
        %v841 = vpop.permute.xlu0 %840
        %844 = vset.pattern.permute.xlu0 0
        %845 = vperm.xlu0 %844, %v787
        %v846 = vpop.permute.xlu0 %845
        %849 = vset.pattern.permute.xlu0 0
        %850 = vperm.xlu0 %849, %v788
        %v851 = vpop.permute.xlu0 %850
        %854 = vset.pattern.permute.xlu0 0
        %855 = vperm.xlu0 %854, %v789
        %v856 = vpop.permute.xlu0 %855
        %859 = vset.pattern.permute.xlu0 0
        %860 = vperm.xlu0 %859, %v790
        %v861 = vpop.permute.xlu0 %860
        %864 = vset.pattern.permute.xlu0 0
        %865 = vperm.xlu0 %864, %v791
        %v866 = vpop.permute.xlu0 %865
        %869 = vset.pattern.permute.xlu0 0
        %870 = vperm.xlu0 %869, %v792
        %v871 = vpop.permute.xlu0 %870
        %874 = vset.pattern.permute.xlu0 0
        %875 = vperm.xlu0 %874, %v793
        %v876 = vpop.permute.xlu0 %875
        %879 = vset.pattern.permute.xlu0 0
        %880 = vperm.xlu0 %879, %v794
        %v881 = vpop.permute.xlu0 %880
        %884 = vset.pattern.permute.xlu0 0
        %885 = vperm.xlu0 %884, %v795
        %v886 = vpop.permute.xlu0 %885
        %889 = vset.pattern.permute.xlu0 0
        %890 = vperm.xlu0 %889, %v796
        %v891 = vpop.permute.xlu0 %890
        %894 = vset.pattern.permute.xlu0 0
        %895 = vperm.xlu0 %894, %v797
        %v896 = vpop.permute.xlu0 %895
        %vm898 = vcmask 261120
        %v900 = vsel %vm898, %v739, 0
        %v903 = vsel %vm898, %v741, 0
        %v906 = vsel %vm898, %v743, 0
        %v909 = vsel %vm898, %v745, 0
        %v912 = vsel %vm898, %v747, 0
        %v915 = vsel %vm898, %v749, 0
        %v918 = vsel %vm898, %v751, 0
        %v921 = vsel %vm898, %v753, 0
        %v924 = vsel %vm898, %v755, 0
        %v927 = vsel %vm898, %v757, 0
        %v930 = vsel %vm898, %v759, 0
        %v933 = vsel %vm898, %v761, 0
        %v936 = vsel %vm898, %v763, 0
        %v939 = vsel %vm898, %v765, 0
        %v942 = vsel %vm898, %v767, 0
        %v945 = vsel %vm898, %v769, 0
        %v948 = vsel %vm898, %v771, 0
        %v951 = vsel %vm898, %v773, 0
        %v954 = vsel %vm898, %v775, 0
        %v957 = vsel %vm898, %v777, 0
        %959 = vmatprep.subr.mxu0 0.0
        %960 = vmatpush1.msra.mxu0 %v718
        %961 = vmatprep.subr.mxu0 0.0
        %962 = vmatpush1.msra.mxu0 %v719
        %963 = vmatprep.subr.mxu0 0.0
        %964 = vmatpush1.msra.mxu0 %v720
        %965 = vmatprep.subr.mxu0 0.0
        %966 = vmatpush1.msra.mxu0 %v721
        %967 = vmatprep.subr.mxu0 0.0
        %968 = vmatpush1.msra.mxu0 %v722
        %969 = vmatprep.subr.mxu0 0.0
        %970 = vmatpush1.msra.mxu0 %v723
        %971 = vmatprep.subr.mxu0 0.0
        %972 = vmatpush1.msra.mxu0 %v724
        %973 = vmatprep.subr.mxu0 0.0
        %974 = vmatpush1.msra.mxu0 %v725
        %975 = vmatprep.subr.mxu0 0.0
        %976 = vmatpush1.msra.mxu0 %v726
        %977 = vmatprep.subr.mxu0 0.0
        %978 = vmatpush1.msra.mxu0 %v727
        %979 = vmatprep.subr.mxu0 0.0
        %980 = vmatpush1.msra.mxu0 %v728
        %981 = vmatprep.subr.mxu0 0.0
        %982 = vmatpush1.msra.mxu0 %v729
        %983 = vmatprep.subr.mxu0 0.0
        %984 = vmatpush1.msra.mxu0 %v730
        %985 = vmatprep.subr.mxu0 0.0
        %986 = vmatpush1.msra.mxu0 %v731
        %987 = vmatprep.subr.mxu0 0.0
        %988 = vmatpush1.msra.mxu0 %v732
        %989 = vmatprep.subr.mxu0 0.0
        %990 = vmatpush1.msra.mxu0 %v733
        %991 = vmatprep.subr.mxu0 0.0
        %992 = vmatpush1.msra.mxu0 %v734
        %993 = vmatprep.subr.mxu0 0.0
        %994 = vmatpush1.msra.mxu0 %v735
        %995 = vmatprep.subr.mxu0 0.0
        %996 = vmatpush1.msra.mxu0 %v736
        %997 = vmatprep.subr.mxu0 0.0
        %998 = vmatpush1.msra.mxu0 %v737
        %999 = vmatprep.subr.mxu0 0.0
        %1000 = vmatpush1.msra.mxu0 0.0
        %1001 = vmatprep.subr.mxu0 0.0
        %1002 = vmatpush1.msra.mxu0 0.0
        %1003 = vmatprep.subr.mxu0 0.0
        %1004 = vmatpush1.msra.mxu0 0.0
        %1005 = vmatprep.subr.mxu0 0.0
        %1006 = vmatpush1.msra.mxu0 0.0
        %1007 = vmatprep.subr.mxu0 0.0
        %1008 = vmatpush1.msra.mxu0 0.0
        %1009 = vmatprep.subr.mxu0 0.0
        %1010 = vmatpush1.msra.mxu0 0.0
        %1011 = vmatprep.subr.mxu0 0.0
        %1012 = vmatpush1.msra.mxu0 0.0
        %1013 = vmatprep.subr.mxu0 0.0
        %1014 = vmatpush1.msra.mxu0 0.0
        %1015 = vmatprep.subr.mxu0 0.0
        %1016 = vmatpush1.msra.mxu0 0.0
        %1017 = vmatprep.subr.mxu0 0.0
        %1018 = vmatpush1.msra.mxu0 0.0
        %1019 = vmatprep.subr.mxu0 0.0
        %1020 = vmatpush1.msra.mxu0 0.0
        %1021 = vmatprep.subr.mxu0 0.0
        %1022 = vmatpush1.msra.mxu0 0.0
        %1023 = vmatprep.mubr.f32.mxu0 %v900
        %1024 = vmatmul.mubr.f32.gmra.mrb[0].mxu0 %v738
        %v1025 = vpop.f32.mrb[0].mxu0
        %v1026 = vadd.f32 %v801, %v1025
        %v1027 = vpop.f32.mrb[0].mxu0
        %1028 = vmatprep.mubr.f32.mxu0 %v903
        %1029 = vmatmul.mubr.f32.gmra.mrb[0].mxu0 %v740
        %v1030 = vpop.f32.mrb[0].mxu0
        %v1031 = vadd.f32 %v806, %v1030
        %v1032 = vpop.f32.mrb[0].mxu0
        %1033 = vmatprep.mubr.f32.mxu0 %v906
        %1034 = vmatmul.mubr.f32.gmra.mrb[0].mxu0 %v742
        %v1035 = vpop.f32.mrb[0].mxu0
        %v1036 = vadd.f32 %v811, %v1035
        %v1037 = vpop.f32.mrb[0].mxu0
        %1038 = vmatprep.mubr.f32.mxu0 %v909
        %1039 = vmatmul.mubr.f32.gmra.mrb[0].mxu0 %v744
        %v1040 = vpop.f32.mrb[0].mxu0
        %v1041 = vadd.f32 %v816, %v1040
        %v1042 = vpop.f32.mrb[0].mxu0
        %1043 = vmatprep.mubr.f32.mxu0 %v912
        %1044 = vmatmul.mubr.f32.gmra.mrb[0].mxu0 %v746
        %v1045 = vpop.f32.mrb[0].mxu0
        %v1046 = vadd.f32 %v821, %v1045
        %v1047 = vpop.f32.mrb[0].mxu0
        %1048 = vmatprep.mubr.f32.mxu0 %v915
        %1049 = vmatmul.mubr.f32.gmra.mrb[0].mxu0 %v748
        %v1050 = vpop.f32.mrb[0].mxu0
        %v1051 = vadd.f32 %v826, %v1050
        %v1052 = vpop.f32.mrb[0].mxu0
        %1053 = vmatprep.mubr.f32.mxu0 %v918
        %1054 = vmatmul.mubr.f32.gmra.mrb[0].mxu0 %v750
        %v1055 = vpop.f32.mrb[0].mxu0
        %v1056 = vadd.f32 %v831, %v1055
        %v1057 = vpop.f32.mrb[0].mxu0
        %1058 = vmatprep.mubr.f32.mxu0 %v921
        %1059 = vmatmul.mubr.f32.gmra.mrb[0].mxu0 %v752
        %v1060 = vpop.f32.mrb[0].mxu0
        %v1061 = vadd.f32 %v836, %v1060
        %v1062 = vpop.f32.mrb[0].mxu0
        %1063 = vmatprep.mubr.f32.mxu0 %v924
        %1064 = vmatmul.mubr.f32.gmra.mrb[0].mxu0 %v754
        %v1065 = vpop.f32.mrb[0].mxu0
        %v1066 = vadd.f32 %v841, %v1065
        %v1067 = vpop.f32.mrb[0].mxu0
        %1068 = vmatprep.mubr.f32.mxu0 %v927
        %1069 = vmatmul.mubr.f32.gmra.mrb[0].mxu0 %v756
        %v1070 = vpop.f32.mrb[0].mxu0
        %v1071 = vadd.f32 %v846, %v1070
        %v1072 = vpop.f32.mrb[0].mxu0
        %1073 = vmatprep.mubr.f32.mxu0 %v930
        %1074 = vmatmul.mubr.f32.gmra.mrb[0].mxu0 %v758
        %v1075 = vpop.f32.mrb[0].mxu0
        %v1076 = vadd.f32 %v851, %v1075
        %v1077 = vpop.f32.mrb[0].mxu0
        %1078 = vmatprep.mubr.f32.mxu0 %v933
        %1079 = vmatmul.mubr.f32.gmra.mrb[0].mxu0 %v760
        %v1080 = vpop.f32.mrb[0].mxu0
        %v1081 = vadd.f32 %v856, %v1080
        %v1082 = vpop.f32.mrb[0].mxu0
        %1083 = vmatprep.mubr.f32.mxu0 %v936
        %1084 = vmatmul.mubr.f32.gmra.mrb[0].mxu0 %v762
        %v1085 = vpop.f32.mrb[0].mxu0
        %v1086 = vadd.f32 %v861, %v1085
        %v1087 = vpop.f32.mrb[0].mxu0
        %1088 = vmatprep.mubr.f32.mxu0 %v939
        %1089 = vmatmul.mubr.f32.gmra.mrb[0].mxu0 %v764
        %v1090 = vpop.f32.mrb[0].mxu0
        %v1091 = vadd.f32 %v866, %v1090
        %v1092 = vpop.f32.mrb[0].mxu0
        %1093 = vmatprep.mubr.f32.mxu0 %v942
        %1094 = vmatmul.mubr.f32.gmra.mrb[0].mxu0 %v766
        %v1095 = vpop.f32.mrb[0].mxu0
        %v1096 = vadd.f32 %v871, %v1095
        %v1097 = vpop.f32.mrb[0].mxu0
        %1098 = vmatprep.mubr.f32.mxu0 %v945
        %1099 = vmatmul.mubr.f32.gmra.mrb[0].mxu0 %v768
        %v1100 = vpop.f32.mrb[0].mxu0
        %v1101 = vadd.f32 %v876, %v1100
        %v1102 = vpop.f32.mrb[0].mxu0
        %1103 = vmatprep.mubr.f32.mxu0 %v948
        %1104 = vmatmul.mubr.f32.gmra.mrb[0].mxu0 %v770
        %v1105 = vpop.f32.mrb[0].mxu0
        %v1106 = vadd.f32 %v881, %v1105
        %v1107 = vpop.f32.mrb[0].mxu0
        %1108 = vmatprep.mubr.f32.mxu0 %v951
        %1109 = vmatmul.mubr.f32.gmra.mrb[0].mxu0 %v772
        %v1110 = vpop.f32.mrb[0].mxu0
        %v1111 = vadd.f32 %v886, %v1110
        %v1112 = vpop.f32.mrb[0].mxu0
        %1113 = vmatprep.mubr.f32.mxu0 %v954
        %1114 = vmatmul.mubr.f32.gmra.mrb[0].mxu0 %v774
        %v1115 = vpop.f32.mrb[0].mxu0
        %v1116 = vadd.f32 %v891, %v1115
        %v1117 = vpop.f32.mrb[0].mxu0
        %1118 = vmatprep.mubr.f32.mxu0 %v957
        %1119 = vmatmul.mubr.f32.gmra.mrb[0].mxu0 %v776
        %v1120 = vpop.f32.mrb[0].mxu0
        %v1121 = vadd.f32 %v896, %v1120
        %v1122 = vpop.f32.mrb[0].mxu0
        %1123 = vdwg.mxu0
        %v1124 = vmax.f32 %v1026, 0.0
        %v1125 = vmax.f32 %v1031, 0.0
        %v1126 = vmax.f32 %v1036, 0.0
        %v1127 = vmax.f32 %v1041, 0.0
        %v1128 = vmax.f32 %v1046, 0.0
        %v1129 = vmax.f32 %v1051, 0.0
        %v1130 = vmax.f32 %v1056, 0.0
        %v1131 = vmax.f32 %v1061, 0.0
        %v1132 = vmax.f32 %v1066, 0.0
        %v1133 = vmax.f32 %v1071, 0.0
        %v1134 = vmax.f32 %v1076, 0.0
        %v1135 = vmax.f32 %v1081, 0.0
        %v1136 = vmax.f32 %v1086, 0.0
        %v1137 = vmax.f32 %v1091, 0.0
        %v1138 = vmax.f32 %v1096, 0.0
        %v1139 = vmax.f32 %v1101, 0.0
        %v1140 = vmax.f32 %v1106, 0.0
        %v1141 = vmax.f32 %v1111, 0.0
        %v1142 = vmax.f32 %v1116, 0.0
        %v1143 = vmax.f32 %v1121, 0.0
        %v1144 = vld [vmem:[%s5] sm:$0xff]
        %v1145 = vld [vmem:[%s5 + $0x8] sm:$0xff]
        %v1146 = vld [vmem:[%s5 + $0x10] sm:$0xff]
        %v1147 = vld [vmem:[%s5 + $0x18] sm:$0xff]
        %v1148 = vld [vmem:[%s5 + $0x20] sm:$0xff]
        %v1149 = vld [vmem:[%s5 + $0x28] sm:$0xff]
        %v1150 = vld [vmem:[%s5 + $0x30] sm:$0xff]
        %v1151 = vld [vmem:[%s5 + $0x38] sm:$0xff]
        %v1152 = vld [vmem:[%s5 + $0x40] sm:$0xff]
        %v1153 = vld [vmem:[%s5 + $0x48] sm:$0xff]
        %v1154 = vld [vmem:[%s6] sm:$0xff]
        %v1155 = vld [vmem:[%s6 + $0x8] sm:$0xff]
        %v1156 = vld [vmem:[%s6 + $0x10] sm:$0xff]
        %v1157 = vld [vmem:[%s6 + $0x18] sm:$0xff]
        %v1158 = vld [vmem:[%s6 + $0x20] sm:$0xff]
        %1160 = vset.pattern.permute.xlu0 0
        %1161 = vperm.xlu0 %1160, %v1154
        %v1162 = vpop.permute.xlu0 %1161
        %1165 = vset.pattern.permute.xlu0 0
        %1166 = vperm.xlu0 %1165, %v1155
        %v1167 = vpop.permute.xlu0 %1166
        %1170 = vset.pattern.permute.xlu0 0
        %1171 = vperm.xlu0 %1170, %v1156
        %v1172 = vpop.permute.xlu0 %1171
        %1175 = vset.pattern.permute.xlu0 0
        %1176 = vperm.xlu0 %1175, %v1157
        %v1177 = vpop.permute.xlu0 %1176
        %1180 = vset.pattern.permute.xlu0 0
        %1181 = vperm.xlu0 %1180, %v1158
        %v1182 = vpop.permute.xlu0 %1181
        %v1185 = vsel %vm898, %v1145, 0
        %v1188 = vsel %vm898, %v1147, 0
        %v1191 = vsel %vm898, %v1149, 0
        %v1194 = vsel %vm898, %v1151, 0
        %v1197 = vsel %vm898, %v1153, 0
        %1199 = vmatprep.subr.mxu0 0.0
        %1200 = vmatpush1.msra.mxu0 %v1124
        %1201 = vmatprep.subr.mxu0 0.0
        %1202 = vmatpush1.msra.mxu0 %v1125
        %1203 = vmatprep.subr.mxu0 0.0
        %1204 = vmatpush1.msra.mxu0 %v1126
        %1205 = vmatprep.subr.mxu0 0.0
        %1206 = vmatpush1.msra.mxu0 %v1127
        %1207 = vmatprep.subr.mxu0 0.0
        %1208 = vmatpush1.msra.mxu0 %v1128
        %1209 = vmatprep.subr.mxu0 0.0
        %1210 = vmatpush1.msra.mxu0 %v1129
        %1211 = vmatprep.subr.mxu0 0.0
        %1212 = vmatpush1.msra.mxu0 %v1130
        %1213 = vmatprep.subr.mxu0 0.0
        %1214 = vmatpush1.msra.mxu0 %v1131
        %1215 = vmatprep.subr.mxu0 0.0
        %1216 = vmatpush1.msra.mxu0 %v1132
        %1217 = vmatprep.subr.mxu0 0.0
        %1218 = vmatpush1.msra.mxu0 %v1133
        %1219 = vmatprep.subr.mxu0 0.0
        %1220 = vmatpush1.msra.mxu0 %v1134
        %1221 = vmatprep.subr.mxu0 0.0
        %1222 = vmatpush1.msra.mxu0 %v1135
        %1223 = vmatprep.subr.mxu0 0.0
        %1224 = vmatpush1.msra.mxu0 %v1136
        %1225 = vmatprep.subr.mxu0 0.0
        %1226 = vmatpush1.msra.mxu0 %v1137
        %1227 = vmatprep.subr.mxu0 0.0
        %1228 = vmatpush1.msra.mxu0 %v1138
        %1229 = vmatprep.subr.mxu0 0.0
        %1230 = vmatpush1.msra.mxu0 %v1139
        %1231 = vmatprep.subr.mxu0 0.0
        %1232 = vmatpush1.msra.mxu0 %v1140
        %1233 = vmatprep.subr.mxu0 0.0
        %1234 = vmatpush1.msra.mxu0 %v1141
        %1235 = vmatprep.subr.mxu0 0.0
        %1236 = vmatpush1.msra.mxu0 %v1142
        %1237 = vmatprep.subr.mxu0 0.0
        %1238 = vmatpush1.msra.mxu0 %v1143
        %1239 = vmatprep.subr.mxu0 0.0
        %1240 = vmatpush1.msra.mxu0 0.0
        %1241 = vmatprep.subr.mxu0 0.0
        %1242 = vmatpush1.msra.mxu0 0.0
        %1243 = vmatprep.subr.mxu0 0.0
        %1244 = vmatpush1.msra.mxu0 0.0
        %1245 = vmatprep.subr.mxu0 0.0
        %1246 = vmatpush1.msra.mxu0 0.0
        %1247 = vmatprep.subr.mxu0 0.0
        %1248 = vmatpush1.msra.mxu0 0.0
        %1249 = vmatprep.subr.mxu0 0.0
        %1250 = vmatpush1.msra.mxu0 0.0
        %1251 = vmatprep.subr.mxu0 0.0
        %1252 = vmatpush1.msra.mxu0 0.0
        %1253 = vmatprep.subr.mxu0 0.0
        %1254 = vmatpush1.msra.mxu0 0.0
        %1255 = vmatprep.subr.mxu0 0.0
        %1256 = vmatpush1.msra.mxu0 0.0
        %1257 = vmatprep.subr.mxu0 0.0
        %1258 = vmatpush1.msra.mxu0 0.0
        %1259 = vmatprep.subr.mxu0 0.0
        %1260 = vmatpush1.msra.mxu0 0.0
        %1261 = vmatprep.subr.mxu0 0.0
        %1262 = vmatpush1.msra.mxu0 0.0
        %1263 = vmatprep.mubr.f32.mxu0 %v1185
        %1264 = vmatmul.mubr.f32.gmra.mrb[0].mxu0 %v1144
        %v1265 = vpop.f32.mrb[0].mxu0
        %v1266 = vadd.f32 %v1162, %v1265
        %v1267 = vpop.f32.mrb[0].mxu0
        %1268 = vmatprep.mubr.f32.mxu0 %v1188
        %1269 = vmatmul.mubr.f32.gmra.mrb[0].mxu0 %v1146
        %v1270 = vpop.f32.mrb[0].mxu0
        %v1271 = vadd.f32 %v1167, %v1270
        %v1272 = vpop.f32.mrb[0].mxu0
        %1273 = vmatprep.mubr.f32.mxu0 %v1191
        %1274 = vmatmul.mubr.f32.gmra.mrb[0].mxu0 %v1148
        %v1275 = vpop.f32.mrb[0].mxu0
        %v1276 = vadd.f32 %v1172, %v1275
        %v1277 = vpop.f32.mrb[0].mxu0
        %1278 = vmatprep.mubr.f32.mxu0 %v1194
        %1279 = vmatmul.mubr.f32.gmra.mrb[0].mxu0 %v1150
        %v1280 = vpop.f32.mrb[0].mxu0
        %v1281 = vadd.f32 %v1177, %v1280
        %v1282 = vpop.f32.mrb[0].mxu0
        %1283 = vmatprep.mubr.f32.mxu0 %v1197
        %1284 = vmatmul.mubr.f32.gmra.mrb[0].mxu0 %v1152
        %v1285 = vpop.f32.mrb[0].mxu0
        %v1286 = vadd.f32 %v1182, %v1285
        %v1287 = vpop.f32.mrb[0].mxu0
        %1288 = vdwg.mxu0
        %vm1289 = vcmp.gt.f32.partialorder %v1140, 0.0
        %vm1290 = vcmp.gt.f32.partialorder %v1141, 0.0
        %vm1291 = vcmp.gt.f32.partialorder %v1142, 0.0
        %vm1292 = vcmp.gt.f32.partialorder %v1143, 0.0
        %v1293 = vld [vmem:[%s9] sm:$0xff]
        %v1294 = vld [vmem:[%s9 + $0x8] sm:$0xff]
        %v1295 = vld [vmem:[%s9 + $0x10] sm:$0xff]
        %v1296 = vld [vmem:[%s9 + $0x18] sm:$0xff]
        %1298 = vset.pattern.permute.xlu0 0
        %1299 = vperm.xlu0 %1298, %v1293
        %v1300 = vpop.permute.xlu0 %1299
        %1303 = vset.pattern.permute.xlu0 0
        %1304 = vperm.xlu0 %1303, %v1294
        %v1305 = vpop.permute.xlu0 %1304
        %1308 = vset.pattern.permute.xlu0 0
        %1309 = vperm.xlu0 %1308, %v1295
        %v1310 = vpop.permute.xlu0 %1309
        %1313 = vset.pattern.permute.xlu0 0
        %1314 = vperm.xlu0 %1313, %v1296
        %v1315 = vpop.permute.xlu0 %1314
        %v1317 = vsel %vm1289, %v1300, 0.0
        %v1318 = vsel %vm1290, %v1305, 0.0
        %v1319 = vsel %vm1291, %v1310, 0.0
        %v1320 = vsel %vm1292, %v1315, 0.0
        %v1321 = vld [vmem:[%s8] sm:$0xff]
        %v1322 = vld [vmem:[%s8 + $0x8] sm:$0xff]
        %v1323 = vld [vmem:[%s8 + $0x10] sm:$0xff]
        %v1324 = vld [vmem:[%s8 + $0x18] sm:$0xff]
        %v1326 = vsel %vm898, %v1321, 0
        %v1329 = vsel %vm898, %v1322, 0
        %v1332 = vsel %vm898, %v1323, 0
        %v1335 = vsel %vm898, %v1324, 0
        %1337 = vmatprep.subr.mxu0 0.0
        %1338 = vmatpush1.msra.mxu0 %v1317
        %1339 = vmatprep.subr.mxu0 0.0
        %1340 = vmatpush1.msra.mxu0 %v1318
        %1341 = vmatprep.subr.mxu0 0.0
        %1342 = vmatpush1.msra.mxu0 %v1319
        %1343 = vmatprep.subr.mxu0 0.0
        %1344 = vmatpush1.msra.mxu0 %v1320
        %1345 = vmatprep.subr.mxu0 0.0
        %1346 = vmatpush1.msra.mxu0 0.0
        %1347 = vmatprep.subr.mxu0 0.0
        %1348 = vmatpush1.msra.mxu0 0.0
        %1349 = vmatprep.subr.mxu0 0.0
        %1350 = vmatpush1.msra.mxu0 0.0
        %1351 = vmatprep.subr.mxu0 0.0
        %1352 = vmatpush1.msra.mxu0 0.0
        %1353 = vmatprep.subr.mxu0 0.0
        %1354 = vmatpush1.msra.mxu0 0.0
        %1355 = vmatprep.subr.mxu0 0.0
        %1356 = vmatpush1.msra.mxu0 0.0
        %1357 = vmatprep.subr.mxu0 0.0
        %1358 = vmatpush1.msra.mxu0 0.0
        %1359 = vmatprep.subr.mxu0 0.0
        %1360 = vmatpush1.msra.mxu0 0.0
        %1361 = vmatprep.subr.mxu0 0.0
        %1362 = vmatpush1.msra.mxu0 0.0
        %1363 = vmatprep.subr.mxu0 0.0
        %1364 = vmatpush1.msra.mxu0 0.0
        %1365 = vmatprep.subr.mxu0 0.0
        %1366 = vmatpush1.msra.mxu0 0.0
        %1367 = vmatprep.subr.mxu0 0.0
        %1368 = vmatpush1.msra.mxu0 0.0
        %1369 = vmatprep.subr.mxu0 0.0
        %1370 = vmatpush1.msra.mxu0 0.0
        %1371 = vmatprep.subr.mxu0 0.0
        %1372 = vmatpush1.msra.mxu0 0.0
        %1373 = vmatprep.subr.mxu0 0.0
        %1374 = vmatpush1.msra.mxu0 0.0
        %1375 = vmatprep.subr.mxu0 0.0
        %1376 = vmatpush1.msra.mxu0 0.0
        %1377 = vmatprep.subr.mxu0 0.0
        %1378 = vmatpush1.msra.mxu0 0.0
        %1379 = vmatprep.subr.mxu0 0.0
        %1380 = vmatpush1.msra.mxu0 0.0
        %1381 = vmatprep.subr.mxu0 0.0
        %1382 = vmatpush1.msra.mxu0 0.0
        %1383 = vmatprep.subr.mxu0 0.0
        %1384 = vmatpush1.msra.mxu0 0.0
        %1385 = vmatprep.subr.mxu0 0.0
        %1386 = vmatpush1.msra.mxu0 0.0
        %1387 = vmatprep.subr.mxu0 0.0
        %1388 = vmatpush1.msra.mxu0 0.0
        %1389 = vmatprep.subr.mxu0 0.0
        %1390 = vmatpush1.msra.mxu0 0.0
        %1391 = vmatprep.subr.mxu0 0.0
        %1392 = vmatpush1.msra.mxu0 0.0
        %1393 = vmatprep.subr.mxu0 0.0
        %1394 = vmatpush1.msra.mxu0 0.0
        %1395 = vmatprep.subr.mxu0 0.0
        %1396 = vmatpush1.msra.mxu0 0.0
        %1397 = vmatprep.subr.mxu0 0.0
        %1398 = vmatpush1.msra.mxu0 0.0
        %1399 = vmatprep.subr.mxu0 0.0
        %1400 = vmatpush1.msra.mxu0 0.0
        %1401 = vmatprep.mubr.f32.mxu0 0.0
        %1402 = vmatmul.mubr.f32.gmra.mrb[0].mxu0 %v1326
        %v1403 = vpop.f32.mrb[0].mxu0
        %v1404 = vadd.f32 0.0, %v1403
        %v1405 = vpop.f32.mrb[0].mxu0
        %1406 = vmatprep.mubr.f32.mxu0 0.0
        %1407 = vmatmul.mubr.f32.gmra.mrb[0].mxu0 %v1329
        %v1408 = vpop.f32.mrb[0].mxu0
        %v1409 = vadd.f32 0.0, %v1408
        %v1410 = vpop.f32.mrb[0].mxu0
        %1411 = vmatprep.mubr.f32.mxu0 0.0
        %1412 = vmatmul.mubr.f32.gmra.mrb[0].mxu0 %v1332
        %v1413 = vpop.f32.mrb[0].mxu0
        %v1414 = vadd.f32 0.0, %v1413
        %v1415 = vpop.f32.mrb[0].mxu0
        %1416 = vmatprep.mubr.f32.mxu0 0.0
        %1417 = vmatmul.mubr.f32.gmra.mrb[0].mxu0 %v1335
        %v1418 = vpop.f32.mrb[0].mxu0
        %v1419 = vadd.f32 0.0, %v1418
        %v1420 = vpop.f32.mrb[0].mxu0
        %1421 = vdwg.mxu0
        %vm1422 = vcmp.gt.f32.partialorder %v734, 0.0
        %vm1423 = vcmp.gt.f32.partialorder %v735, 0.0
        %vm1424 = vcmp.gt.f32.partialorder %v736, 0.0
        %vm1425 = vcmp.gt.f32.partialorder %v737, 0.0
        %v1426 = vsel %vm1422, %v1404, 0.0
        %v1427 = vsel %vm1423, %v1409, 0.0
        %v1428 = vsel %vm1424, %v1414, 0.0
        %v1429 = vsel %vm1425, %v1419, 0.0
        %v1430 = vld [vmem:[%s7] sm:$0xff]
        %v1432 = vsel %vm898, %v1430, 0
        %1434 = vmatprep.subr.mxu0 0.0
        %1435 = vmatpush1.msra.mxu0 %v1426
        %1436 = vmatprep.subr.mxu0 0.0
        %1437 = vmatpush1.msra.mxu0 %v1427
        %1438 = vmatprep.subr.mxu0 0.0
        %1439 = vmatpush1.msra.mxu0 %v1428
        %1440 = vmatprep.subr.mxu0 0.0
        %1441 = vmatpush1.msra.mxu0 %v1429
        %1442 = vmatprep.subr.mxu0 0.0
        %1443 = vmatpush1.msra.mxu0 0.0
        %1444 = vmatprep.subr.mxu0 0.0
        %1445 = vmatpush1.msra.mxu0 0.0
        %1446 = vmatprep.subr.mxu0 0.0
        %1447 = vmatpush1.msra.mxu0 0.0
        %1448 = vmatprep.subr.mxu0 0.0
        %1449 = vmatpush1.msra.mxu0 0.0
        %1450 = vmatprep.subr.mxu0 0.0
        %1451 = vmatpush1.msra.mxu0 0.0
        %1452 = vmatprep.subr.mxu0 0.0
        %1453 = vmatpush1.msra.mxu0 0.0
        %1454 = vmatprep.subr.mxu0 0.0
        %1455 = vmatpush1.msra.mxu0 0.0
        %1456 = vmatprep.subr.mxu0 0.0
        %1457 = vmatpush1.msra.mxu0 0.0
        %1458 = vmatprep.subr.mxu0 0.0
        %1459 = vmatpush1.msra.mxu0 0.0
        %1460 = vmatprep.subr.mxu0 0.0
        %1461 = vmatpush1.msra.mxu0 0.0
        %1462 = vmatprep.subr.mxu0 0.0
        %1463 = vmatpush1.msra.mxu0 0.0
        %1464 = vmatprep.subr.mxu0 0.0
        %1465 = vmatpush1.msra.mxu0 0.0
        %1466 = vmatprep.subr.mxu0 0.0
        %1467 = vmatpush1.msra.mxu0 0.0
        %1468 = vmatprep.subr.mxu0 0.0
        %1469 = vmatpush1.msra.mxu0 0.0
        %1470 = vmatprep.subr.mxu0 0.0
        %1471 = vmatpush1.msra.mxu0 0.0
        %1472 = vmatprep.subr.mxu0 0.0
        %1473 = vmatpush1.msra.mxu0 0.0
        %1474 = vmatprep.subr.mxu0 0.0
        %1475 = vmatpush1.msra.mxu0 0.0
        %1476 = vmatprep.subr.mxu0 0.0
        %1477 = vmatpush1.msra.mxu0 0.0
        %1478 = vmatprep.subr.mxu0 0.0
        %1479 = vmatpush1.msra.mxu0 0.0
        %1480 = vmatprep.subr.mxu0 0.0
        %1481 = vmatpush1.msra.mxu0 0.0
        %1482 = vmatprep.subr.mxu0 0.0
        %1483 = vmatpush1.msra.mxu0 0.0
        %1484 = vmatprep.subr.mxu0 0.0
        %1485 = vmatpush1.msra.mxu0 0.0
        %1486 = vmatprep.subr.mxu0 0.0
        %1487 = vmatpush1.msra.mxu0 0.0
        %1488 = vmatprep.subr.mxu0 0.0
        %1489 = vmatpush1.msra.mxu0 0.0
        %1490 = vmatprep.subr.mxu0 0.0
        %1491 = vmatpush1.msra.mxu0 0.0
        %1492 = vmatprep.subr.mxu0 0.0
        %1493 = vmatpush1.msra.mxu0 0.0
        %1494 = vmatprep.subr.mxu0 0.0
        %1495 = vmatpush1.msra.mxu0 0.0
        %1496 = vmatprep.subr.mxu0 0.0
        %1497 = vmatpush1.msra.mxu0 0.0
        %1498 = vmatprep.mubr.f32.mxu0 0.0
        %1499 = vmatmul.mubr.f32.gmra.mrb[0].mxu0 %v1432
        %v1500 = vpop.f32.mrb[0].mxu0
        %v1501 = vadd.f32 0.0, %v1500
        %v1502 = vpop.f32.mrb[0].mxu0
        %1503 = vdwg.mxu0
        %v1504 = vmul.f32 %v1501, %v1266
        %v1505 = vrot.slane %v1504, 4
        %v1506 = vadd.f32 %v1504, %v1505
        %v1507 = vrot.slane %v1506, 2
        %v1508 = vadd.f32 %v1506, %v1507
        %v1509 = vrot.slane %v1508, 1
        %v1510 = vadd.f32 %v1508, %v1509
        %v1511 = vmul.f32 %v1286, 0.5
        %v1512 = vadd.f32 %v1510, %v1511
        %v1513 = vmul.f32 %v1501, %v1276
        %v1514 = vrot.slane %v1513, 4
        %v1515 = vadd.f32 %v1513, %v1514
        %v1516 = vrot.slane %v1515, 2
        %v1517 = vadd.f32 %v1515, %v1516
        %v1518 = vrot.slane %v1517, 1
        %v1519 = vadd.f32 %v1517, %v1518
        %v1520 = vmul.f32 %v1271, %v1519
        %v1521 = vadd.f32 %v1512, %v1520
        %v1522 = vmul.f32 %v1501, %v1281
        %v1523 = vrot.slane %v1522, 4
        %v1524 = vadd.f32 %v1522, %v1523
        %v1525 = vrot.slane %v1524, 2
        %v1526 = vadd.f32 %v1524, %v1525
        %v1527 = vrot.slane %v1526, 1
        %v1528 = vadd.f32 %v1526, %v1527
        %v1529 = vmul.f32 %v1271, %v1528
        %v1531 = vrot.slane %v1529, 1
        %v1533 = vadd.f32 %v1521, %v1531
        %v1534 = vmul.f32 %v1501, %v1501
        %v1535 = vrot.slane %v1534, 4
        %v1536 = vadd.f32 %v1534, %v1535
        %v1537 = vrot.slane %v1536, 2
        %v1538 = vadd.f32 %v1536, %v1537
        %v1539 = vrot.slane %v1538, 1
        %v1540 = vadd.f32 %v1538, %v1539
        %v1541 = vadd.f32 %v1540, 1e-06
        %v1542 = vsub.f32 0.0, %v1533
        %v1543 = vrcp.pop %v1541
        %v1544 = vmul.f32 %v1542, %v1543
        %v1545 = vmax.f32 %v1544, 0.0
        %v1546 = vlaneseq
        %v1547 = vshrl.u32 %v1546, 7
        %v1548 = vsub.s32 0, %v1547
        %v1549 = vrot.slane %v1545, %v1548
        %v1550 = vmul.f32 %v1549, %v1501
        %v1551 = vadd.f32 %v1266, %v1550
        %1552 = vst [vmem:[%s346] sm:$0xff] %v1551
        %1553 = vst [vmem:[%s346 + $0x8] sm:$0xff] %v1271
        %1554 = vst [vmem:[%s346 + $0x10] sm:$0xff] %v1276
        %1555 = vst [vmem:[%s346 + $0x18] sm:$0xff] %v1281
        %1556 = vst [vmem:[%s346 + $0x20] sm:$0xff] %v1286
        %s1557 = sand.u32 %s244, 1
        %s1558 = sand.u32 %s244, 1
        %s1559 = smul.addr %s1558, 40
        %s1560 = scalar_lea.vmem [#allocation2], %s1559
        // Predicated region
        $region61: #{safty_forward.1} parent=59 // pred_check
          %p1561 = pneg %p254
        $region62: #{safty_forward.1} parent=59 // pred_check_branch
          %1563 = sbr.rel (%p1561) target = $region64
        $region63: #{safty_forward.1} parent=59 // pred_region
          %s1564 = smul.addr %s21, 8
          %s1565 = scalar_lea.vmem %s10, %s1564
          // Predicated region
          $region65: #{safty_forward.1} parent=63 // pred_check
            _
          $region66: #{safty_forward.1} parent=63 // pred_check_branch
            %1567 = sbr.rel (0) target = $region68
          $region67: #{safty_forward.1} parent=63 // pred_region
            // Predicated region
            $region69: #{safty_forward.1} parent=67 // pred_check
              _
            $region70: #{safty_forward.1} parent=67 // pred_check_branch
              %1569 = sbr.rel (0) target = $region72
            $region71: #{safty_forward.1} parent=67 // pred_region
              // Predicated region
              $region84: #{safty_forward.1} parent=71 // pred_check
                _
              $region85: #{safty_forward.1} parent=71 // pred_check_branch
                %1592 = sbr.rel (0) target = $region87
              $region86: #{safty_forward.1} parent=71 // pred_region
                loop: start=0, step=1, limit=1
                $region88: #{safty_forward.1} parent=86 // loop_pre_header
                  _
                $region89: #{safty_forward.1} parent=86 // loop_header
                  %s1594 = sphi 0, %s1598
                  %p1595 = scmp.ge.s32.totalorder %s1594, 1
                  %s1599 = sphi %s1560, %s1560
                  %s1600 = sphi %s1565, %s1565
                $region90: #{safty_forward.1} parent=86 // loop_header_branch
                  %1597 = sbr.rel (%p1595) target = $region94
                $region91: #{safty_forward.1} parent=86 // loop_body
                  %v1601 = vld [vmem:[%s1599] sm:$0xff]
                  %1602 = vst [vmem:[%s1600] sm:$0xff] %v1601
                  %v1603 = vld [vmem:[%s1599 + $0x8] sm:$0xff]
                  %1604 = vst [vmem:[%s1600 + $0x10] sm:$0xff] %v1603
                  %v1605 = vld [vmem:[%s1599 + $0x10] sm:$0xff]
                  %1606 = vst [vmem:[%s1600 + $0x20] sm:$0xff] %v1605
                  %v1607 = vld [vmem:[%s1599 + $0x18] sm:$0xff]
                  %1608 = vst [vmem:[%s1600 + $0x30] sm:$0xff] %v1607
                  %v1609 = vld [vmem:[%s1599 + $0x20] sm:$0xff]
                  %1610 = vst [vmem:[%s1600 + $0x40] sm:$0xff] %v1609
                $region92: #{safty_forward.1} parent=86 // loop_footer
                  %s1598 = sadd.s32 1, %s1594
                $region93: #{safty_forward.1} parent=86 // loop_footer_branch
                  %1593 = sbr.rel target = $region89
                $region94: #{safty_forward.1} parent=86 // loop_exit
                  _
              $region87: #{safty_forward.1} parent=71 // pred_fallthru
                _
              // Predicated region
              $region95: #{safty_forward.1} parent=71 // pred_check
                _
              $region96: #{safty_forward.1} parent=71 // pred_check_branch
                %1612 = sbr.rel target = $region98
              $region97: #{safty_forward.1} parent=71 // pred_region
                _
              $region98: #{safty_forward.1} parent=71 // pred_fallthru
                _
            $region72: #{safty_forward.1} parent=67 // pred_fallthru
              _
            // Predicated region
            $region73: #{safty_forward.1} parent=67 // pred_check
              _
            $region74: #{safty_forward.1} parent=67 // pred_check_branch
              %1571 = sbr.rel target = $region76
            $region75: #{safty_forward.1} parent=67 // pred_region
              loop: start=0, step=1, limit=1
              $region77: #{safty_forward.1} parent=75 // loop_pre_header
                _
              $region78: #{safty_forward.1} parent=75 // loop_header
                %s1574 = sphi 0, %s1578
                %p1575 = scmp.ge.s32.totalorder %s1574, 1
                %s1579 = sphi %s1560, %s1560
                %s1580 = sphi %s1565, %s1565
              $region79: #{safty_forward.1} parent=75 // loop_header_branch
                %1577 = sbr.rel (%p1575) target = $region83
              $region80: #{safty_forward.1} parent=75 // loop_body
                %v1581 = vld [vmem:[%s1579] sm:$0xff]
                %1582 = vst [vmem:[%s1580] sm:$0xff] %v1581
                %v1583 = vld [vmem:[%s1579 + $0x8] sm:$0xff]
                %1584 = vst [vmem:[%s1580 + $0x10] sm:$0xff] %v1583
                %v1585 = vld [vmem:[%s1579 + $0x10] sm:$0xff]
                %1586 = vst [vmem:[%s1580 + $0x20] sm:$0xff] %v1585
                %v1587 = vld [vmem:[%s1579 + $0x18] sm:$0xff]
                %1588 = vst [vmem:[%s1580 + $0x30] sm:$0xff] %v1587
                %v1589 = vld [vmem:[%s1579 + $0x20] sm:$0xff]
                %1590 = vst [vmem:[%s1580 + $0x40] sm:$0xff] %v1589
              $region81: #{safty_forward.1} parent=75 // loop_footer
                %s1578 = sadd.s32 1, %s1574
              $region82: #{safty_forward.1} parent=75 // loop_footer_branch
                %1573 = sbr.rel target = $region78
              $region83: #{safty_forward.1} parent=75 // loop_exit
                _
            $region76: #{safty_forward.1} parent=67 // pred_fallthru
              _
          $region68: #{safty_forward.1} parent=63 // pred_fallthru
            _
          %1613 = vnop
        $region64: #{safty_forward.1} parent=59 // pred_fallthru
          _
      $region60: #{safty_forward.1} parent=5 // pred_fallthru
        _
      %p1614 = scmp.le.s32.totalorder 2, %s16
      // Predicated region
      $region99: #{safty_forward.1} parent=5 // pred_check
        %p1615 = pneg %p1614
      $region100: #{safty_forward.1} parent=5 // pred_check_branch
        %1617 = sbr.rel (%p1615) target = $region102
      $region101: #{safty_forward.1} parent=5 // pred_region
        %s1618 = ssub.s32 %s16, 2
        // Predicated region
        $region103: #{safty_forward.1} parent=101 // pred_check
          %p1619 = pneg %p260
        $region104: #{safty_forward.1} parent=101 // pred_check_branch
          %1621 = sbr.rel (%p1619) target = $region106
        $region105: #{safty_forward.1} parent=101 // pred_region
          %s1622 = sand.u32 %s245, 1
          %s1623 = sand.u32 %s245, 1
          %s1624 = smul.addr %s1623, 40
          %s1625 = scalar_lea.vmem [#allocation2], %s1624
        $region106: #{safty_forward.1} parent=101 // pred_fallthru
          _
      $region102: #{safty_forward.1} parent=5 // pred_fallthru
        _
    $region6: #{safty_forward.1} parent=1 // loop_footer
      %s20 = sadd.s32 1, %s16
    $region7: #{safty_forward.1} parent=1 // loop_footer_branch
      %15 = sbr.rel target = $region3
    $region8: #{safty_forward.1} parent=1 // loop_exit
      _

</llo_original>
